<compile_context>
chip_gen: v6e
topology: v6e:2x2x1
jax: 0.10.0
libtpu: 0.0.40
codegen_flags: <defaults>
</compile_context>

<pallas_src>
import functools

import jax
import jax.numpy as jnp
from jax.experimental import pallas as pl
from jax.experimental.pallas import tpu as pltpu


# ------------------------------ Pallas kernel -------------------------------


def _elu(x):
    # ELU(alpha=1); clamp the exp argument so the unselected branch can't overflow.
    return jnp.where(x > 0, x, jnp.exp(jnp.minimum(x, 0.0)) - 1.0)


def _branch_body(x, w1, w2, c2, wd, wp, b3, r, mask, h2p_ref,
                 *, C, F1, K1, P1, Wv):
    """One SpatiotemporalCNN branch on a lane-packed batch chunk.

    x    : (C, Wb)      zero-padded input, one S-wide slab per sample
    w1   : (F1, K1)     conv1 temporal weights (BN1 scale folded in)
    w2   : (DF1, F1*C)  block-diagonal grouped spatial conv (BN2 scale folded in)
    c2   : (DF1, 1)     BN1-shift pushed through conv2 + BN2 shift
    wd   : (DF1, K1)    depthwise temporal weights
    wp   : (F2, DF1)    pointwise weights (BN3 scale folded in)
    b3   : (F2, 1)      BN3 shift
    r    : (F2, Wv)     fused avgpool(1,8) + ConstrainedDense per-lane weights
    mask : (1, Wv)      1 on valid conv1-output lanes of each slab, else 0
    Returns (1, Wv): per-lane classifier contribution (zero on non-pooled lanes).
    """
    DF1 = w2.shape[0]

    # conv1 (temporal MACs) contracted immediately through the grouped spatial
    # conv2: per temporal filter f1, K1 shifted-slice MACs on the raw (C, Wv)
    # input followed by one (DF1, C) @ (C, Wv) MXU matmul.
    h2 = jnp.zeros((DF1, Wv), jnp.float32)
    for f1 in range(F1):
        acc = jnp.zeros((C, Wv), jnp.float32)
        for k in range(K1):
            acc = acc + w1[f1:f1 + 1, k:k + 1] * x[:, k:k + Wv]
        h2 = h2 + jnp.dot(w2[:, f1 * C:(f1 + 1) * C], acc,
                          preferred_element_type=jnp.float32)
    h2 = _elu(h2 + c2)          # BN2 + ELU (dropout = identity at inference)
    h2 = h2 * mask              # zero junk lanes so they can't leak through padding

    # depthwise temporal conv: per-sample zero padding realised by writing the
    # masked activations at lane offset P1 into a pre-zeroed VMEM scratch slab.
    h2p_ref[...] = jnp.zeros(h2p_ref.shape, jnp.float32)
    h2p_ref[:, P1:P1 + Wv] = h2
    h2p = h2p_ref[...]
    acc3 = jnp.zeros((DF1, Wv), jnp.float32)
    for k in range(K1):
        acc3 = acc3 + wd[:, k:k + 1] * h2p[:, k:k + Wv]

    # pointwise conv + BN3 + ELU
    h3 = _elu(jnp.dot(wp, acc3, preferred_element_type=jnp.float32) + b3)

    # fused AvgPool2d((1,8)) + flatten + fc contraction: r already carries
    # fc_weight[f2, j] / 8 replicated over the 8 pooled lanes (0 elsewhere).
    return jnp.sum(h3 * r, axis=0, keepdims=True)          # (1, Wv)


def _dual_kernel(xa_ref, w1a_ref, w2a_ref, c2a_ref, wda_ref, wpa_ref, b3a_ref,
                 ra_ref,
                 xb_ref, w1b_ref, w2b_ref, c2b_ref, wdb_ref, wpb_ref, b3b_ref,
                 rb_ref,
                 mask_ref, ssum_ref, bias_ref,
                 out_ref,
                 h2pa_ref, h2pb_ref,
                 *, Ca, Cb, F1a, F1b, K1, P1, Wv):
    mask = mask_ref[...]
    za = _branch_body(xa_ref[0], w1a_ref[...], w2a_ref[...], c2a_ref[...],
                      wda_ref[...], wpa_ref[...], b3a_ref[...], ra_ref[...],
                      mask, h2pa_ref, C=Ca, F1=F1a, K1=K1, P1=P1, Wv=Wv)
    zb = _branch_body(xb_ref[0], w1b_ref[...], w2b_ref[...], c2b_ref[...],
                      wdb_ref[...], wpb_ref[...], b3b_ref[...], rb_ref[...],
                      mask, h2pb_ref, C=Cb, F1=F1b, K1=K1, P1=P1, Wv=Wv)
    # per-sample slab sums via one small MXU matmul + classifier bias;
    # lane-dense (1, Nb) output per chunk.
    out_ref[0] = jnp.dot(za + zb, ssum_ref[...],
                         preferred_element_type=jnp.float32) + bias_ref[...]


# ------------------------------- JAX wrappers --------------------------------


def _fold_bn(gamma, beta, mean, var, eps=1e-5):
    scale = gamma / jnp.sqrt(var + eps)
    return scale, beta - mean * scale


def _prep_branch(p, C, fc_mat, *, npool, S, Nb, Wv):
    """Fold BN (inference) + max-norm constraints into kernel-ready weights."""
    F1 = p['w1'].shape[0]
    DF1 = p['w2'].shape[0]
    D = DF1 // F1
    F2 = p['wp'].shape[0]

    s1, sh1 = _fold_bn(*p['bn1'])                        # (F1,)
    s2, sh2 = _fold_bn(*p['bn2'])                        # (DF1,)
    s3, sh3 = _fold_bn(*p['bn3'])                        # (F2,)

    w1f = p['w1'][:, 0, 0, :] * s1[:, None]              # (F1, K1)

    # conv2: max-norm over dim 0 (as in the torch code), block-diagonal expand,
    # BN2 scale folded into rows, BN1 shift pushed through into a constant.
    w2 = p['w2']
    norm = jnp.sqrt(jnp.sum(w2 * w2, axis=0, keepdims=True))
    w2 = w2 * (jnp.clip(norm, 0.0, 1.0) / (1e-8 + norm))
    w2c = w2[:, 0, :, 0]                                  # (DF1, C)
    blk = (jnp.arange(DF1)[:, None] // D
           == jnp.arange(F1)[None, :]).astype(jnp.float32)
    W2f = (blk[:, :, None] * w2c[:, None, :]).reshape(DF1, F1 * C) * s2[:, None]
    b1e = jnp.repeat(sh1, C)[:, None]                     # (F1*C, 1)
    c2 = W2f @ b1e + sh2[:, None]                         # (DF1, 1)

    wd = p['wd'][:, 0, 0, :]                              # (DF1, K1)
    wpf = p['wp'][:, :, 0, 0] * s3[:, None]               # (F2, DF1)
    b3e = sh3[:, None]                                    # (F2, 1)

    # fused avgpool(1,8) + fc weights: per slab, lane 8*j + r carries fc[f2, j]/8.
    r_slab = jnp.zeros((F2, S), jnp.float32)
    r_slab = r_slab.at[:, :8 * npool].set(jnp.repeat(fc_mat / 8.0, 8, axis=1))
    r_tiled = jnp.tile(r_slab, (1, Nb))[:, :Wv]
    return dict(w1=w1f, w2=W2f, c2=c2, wd=wd, wp=wpf, b3=b3e, r=r_tiled)


def dual_forward(a, b, pa, pb, fcW, fcb, fs, lane_budget=4096):
    """a: (N, C_A, T), b: (N, C_B, T). Returns (N, 1)."""
    N, Ca, T = a.shape
    Cb = b.shape[1]
    assert b.shape[0] == N and b.shape[2] == T

    K1, P1 = fs // 2, fs // 4
    Tp1 = T + 2 * P1
    T1 = Tp1 - K1 + 1
    Tp2 = T1 + 2 * P1
    T2 = Tp2 - K1 + 1
    npool = T2 // 8
    S = max(Tp1, Tp2)                       # per-sample lane slab stride

    # Batch chunking: lane-pack Nb samples per grid step.  The lane budget keeps
    # all f32 intermediates comfortably inside scoped VMEM on v5e/v6e/v7x.
    Nb = max(1, min(N, lane_budget // S))
    num_chunks = -(-N // Nb)
    N_pad = num_chunks * Nb
    Wb = Nb * S
    Wv = Wb - (K1 - 1)                      # accumulation width (all valid lanes)

    F1a, F1b = pa['w1'].shape[0], pb['w1'].shape[0]
    DF1a, DF1b = pa['w2'].shape[0], pb['w2'].shape[0]
    F2a, F2b = pa['wp'].shape[0], pb['wp'].shape[0]

    # final ConstrainedDense: max-norm (norm over dim 0, as in the torch code),
    # then split per branch and fold into the per-lane pooling weights.
    norm = jnp.sqrt(jnp.sum(fcW * fcW, axis=0, keepdims=True))
    Wc = fcW * (jnp.clip(norm, 0.0, 0.25) / (1e-8 + norm))       # (1, Kin)
    fa_mat = Wc[0, :F2a * npool].reshape(F2a, npool)
    fb_mat = Wc[0, F2a * npool:].reshape(F2b, npool)
    bias = fcb.reshape(1, 1).astype(jnp.float32)

    A = _prep_branch(pa, Ca, fa_mat, npool=npool, S=S, Nb=Nb, Wv=Wv)
    B = _prep_branch(pb, Cb, fb_mat, npool=npool, S=S, Nb=Nb, Wv=Wv)

    def pack(x, C):
        arr = jnp.zeros((N_pad, C, S), jnp.float32)
        arr = arr.at[:N, :, P1:P1 + T].set(x.astype(jnp.float32))
        return (arr.reshape(num_chunks, Nb, C, S)
                   .transpose(0, 2, 1, 3)
                   .reshape(num_chunks, C, Wb))

    xa = pack(a, Ca)
    xb = pack(b, Cb)

    mask = jnp.tile(jnp.zeros((1, S), jnp.float32).at[:, :T1].set(1.0),
                    (1, Nb))[:, :Wv]                              # (1, Wv)
    ssum = (jnp.arange(Wv)[:, None] // S
            == jnp.arange(Nb)[None, :]).astype(jnp.float32)       # (Wv, Nb)

    kernel = functools.partial(_dual_kernel, Ca=Ca, Cb=Cb, F1a=F1a, F1b=F1b,
                               K1=K1, P1=P1, Wv=Wv)

    def fixed(arr):
        zeros = (0,) * arr.ndim
        return pl.BlockSpec(arr.shape, lambda i: zeros)

    out = pl.pallas_call(
        kernel,
        out_shape=jax.ShapeDtypeStruct((num_chunks, 1, Nb), jnp.float32),
        grid=(num_chunks,),
        in_specs=[
            pl.BlockSpec((1, Ca, Wb), lambda i: (i, 0, 0)),
            fixed(A['w1']), fixed(A['w2']), fixed(A['c2']), fixed(A['wd']),
            fixed(A['wp']), fixed(A['b3']), fixed(A['r']),
            pl.BlockSpec((1, Cb, Wb), lambda i: (i, 0, 0)),
            fixed(B['w1']), fixed(B['w2']), fixed(B['c2']), fixed(B['wd']),
            fixed(B['wp']), fixed(B['b3']), fixed(B['r']),
            fixed(mask), fixed(ssum), fixed(bias),
        ],
        out_specs=pl.BlockSpec((1, 1, Nb), lambda i: (i, 0, 0)),
        scratch_shapes=[pltpu.VMEM((DF1a, Wb), jnp.float32),
                        pltpu.VMEM((DF1b, Wb), jnp.float32)],
        compiler_params=pltpu.CompilerParams(
            dimension_semantics=("parallel",)),
    )(xa, A['w1'], A['w2'], A['c2'], A['wd'], A['wp'], A['b3'], A['r'],
      xb, B['w1'], B['w2'], B['c2'], B['wd'], B['wp'], B['b3'], B['r'],
      mask, ssum, bias)

    return out.reshape(N_pad, 1)[:N]


# --------------------------- pure-JAX reference ------------------------------


def _conv(x, w, padding, groups=1):
    return jax.lax.conv_general_dilated(
        x, w, window_strides=(1, 1), padding=padding,
        dimension_numbers=('NCHW', 'OIHW', 'NCHW'),
        feature_group_count=groups,
        precision=jax.lax.Precision.HIGHEST)


def _bn(x, p, eps=1e-5):
    g, b, m, v = p
    rs = lambda a: a[None, :, None, None]
    return (x - rs(m)) / jnp.sqrt(rs(v) + eps) * rs(g) + rs(b)


def ref_branch(x, p, fs):
    K1, P1 = fs // 2, fs // 4
    F1 = p['w1'].shape[0]
    DF1 = p['w2'].shape[0]
    h = _conv(x[:, None].astype(jnp.float32), p['w1'], ((0, 0), (P1, P1)))
    h = _bn(h, p['bn1'])
    w2 = p['w2']
    norm = jnp.sqrt(jnp.sum(w2 * w2, axis=0, keepdims=True))
    w2 = w2 * (jnp.clip(norm, 0.0, 1.0) / (1e-8 + norm))
    h = _conv(h, w2, ((0, 0), (0, 0)), groups=F1)
    h = _bn(h, p['bn2'])
    h = jax.nn.elu(h)
    h = _conv(h, p['wd'], ((0, 0), (P1, P1)), groups=DF1)
    h = _conv(h, p['wp'], ((0, 0), (0, 0)))
    h = _bn(h, p['bn3'])
    h = jax.nn.elu(h)
    N, F2, _, T2 = h.shape
    npool = T2 // 8
    h = h[..., :npool * 8].reshape(N, F2, 1, npool, 8).mean(-1)
    return h.reshape(N, F2 * npool)


def ref_forward(a, b, pa, pb, fcW, fcb, fs):
    x = jnp.concatenate([ref_branch(a, pa, fs), ref_branch(b, pb, fs)], axis=-1)
    norm = jnp.sqrt(jnp.sum(fcW * fcW, axis=0, keepdims=True))
    Ws = fcW * (jnp.clip(norm, 0.0, 0.25) / (1e-8 + norm))
    return x @ Ws.T + fcb[None, :]


# ---------------------------------- params -----------------------------------


def init_branch_params(key, C, F1, D, F2, fs):
    K1 = fs // 2
    DF1 = D * F1
    ks = jax.random.split(key, 7)

    def nrm(k, shape, scale=0.3):
        return scale * jax.random.normal(k, shape, jnp.float32)

    def bn_params(k, ch):
        k1, k2, k3, k4 = jax.random.split(k, 4)
        gamma = 1.0 + 0.1 * jax.random.normal(k1, (ch,), jnp.float32)
        beta = 0.1 * jax.random.normal(k2, (ch,), jnp.float32)
        mean = 0.1 * jax.random.normal(k3, (ch,), jnp.float32)
        var = jax.random.uniform(k4, (ch,), jnp.float32, minval=0.5, maxval=1.5)
        return (gamma, beta, mean, var)

    return dict(
        w1=nrm(ks[0], (F1, 1, 1, K1)),          # conv1 (temporal)
        bn1=bn_params(ks[1], F1),
        w2=nrm(ks[2], (DF1, 1, C, 1)),          # ConstrainedConv2d (grouped spatial)
        bn2=bn_params(ks[3], DF1),
        wd=nrm(ks[4], (DF1, 1, 1, K1)),         # separable: depthwise
        wp=nrm(ks[5], (F2, DF1, 1, 1)),         # separable: pointwise
        bn3=bn_params(ks[6], F2),
    )


if __name__ == "__main__":
    fs, T, N = 8, 16, 2
    A = dict(C=4, F1=4, D=2, F2=8)
    B = dict(C=6, F1=2, D=2, F2=4)

    key = jax.random.PRNGKey(0)
    ka, kb, kfc, kfb, kxa, kxb = jax.random.split(key, 6)
    pa = init_branch_params(ka, A['C'], A['F1'], A['D'], A['F2'], fs)
    pb = init_branch_params(kb, B['C'], B['F1'], B['D'], B['F2'], fs)

    Kin = (A['F2'] + B['F2']) * (T // 8)
    fcW = 0.3 * jax.random.normal(kfc, (1, Kin), jnp.float32)
    fcb = 0.1 * jax.random.normal(kfb, (1,), jnp.float32)

    a = jax.random.normal(kxa, (N, A['C'], T), jnp.float32)
    b = jax.random.normal(kxb, (N, B['C'], T), jnp.float32)

    out = dual_forward(a, b, pa, pb, fcW, fcb, fs)
    out = jax.block_until_ready(out)

    ref = ref_forward(a, b, pa, pb, fcW, fcb, fs)
    assert out.shape == (N, 1), out.shape
    assert jnp.allclose(out, ref, atol=2e-3, rtol=2e-3), (out, ref)
    print("KERNEL_OK")
</pallas_src>

<mosaic_0001>
module attributes {stable_mosaic.version = 11 : i64} {
  func.func @_dual_kernel(%arg0: i32, %arg1: memref<1x4x42xf32, #tpu.memory_space<vmem>>, %arg2: memref<4x4xf32, #tpu.memory_space<vmem>>, %arg3: memref<8x16xf32, #tpu.memory_space<vmem>>, %arg4: memref<8x1xf32, #tpu.memory_space<vmem>>, %arg5: memref<8x4xf32, #tpu.memory_space<vmem>>, %arg6: memref<8x8xf32, #tpu.memory_space<vmem>>, %arg7: memref<8x1xf32, #tpu.memory_space<vmem>>, %arg8: memref<8x39xf32, #tpu.memory_space<vmem>>, %arg9: memref<1x6x42xf32, #tpu.memory_space<vmem>>, %arg10: memref<2x4xf32, #tpu.memory_space<vmem>>, %arg11: memref<4x12xf32, #tpu.memory_space<vmem>>, %arg12: memref<4x1xf32, #tpu.memory_space<vmem>>, %arg13: memref<4x4xf32, #tpu.memory_space<vmem>>, %arg14: memref<4x4xf32, #tpu.memory_space<vmem>>, %arg15: memref<4x1xf32, #tpu.memory_space<vmem>>, %arg16: memref<4x39xf32, #tpu.memory_space<vmem>>, %arg17: memref<1x39xf32, #tpu.memory_space<vmem>>, %arg18: memref<39x2xf32, #tpu.memory_space<vmem>>, %arg19: memref<1x1xf32, #tpu.memory_space<vmem>>, %arg20: memref<1x1x2xf32, #tpu.memory_space<vmem>>, %arg21: memref<8x42xf32, #tpu.memory_space<vmem>>, %arg22: memref<4x42xf32, #tpu.memory_space<vmem>>) attributes {dimension_semantics = [#tpu.dimension_semantics<parallel>], iteration_bounds = array<i64: 1>, scalar_prefetch = 0 : i64, scratch_operands = 2 : i64, tpu.core_type = #tpu.core_type<tc>, window_params = [{transform_indices = @transform_0, window_bounds = array<i64: 1, 4, 42>}, {pipeline_mode = #tpu.pipeline_mode<synchronous>, transform_indices = @transform_1, window_bounds = array<i64: 4, 4>}, {pipeline_mode = #tpu.pipeline_mode<synchronous>, transform_indices = @transform_2, window_bounds = array<i64: 8, 16>}, {pipeline_mode = #tpu.pipeline_mode<synchronous>, transform_indices = @transform_3, window_bounds = array<i64: 8, 1>}, {pipeline_mode = #tpu.pipeline_mode<synchronous>, transform_indices = @transform_4, window_bounds = array<i64: 8, 4>}, {pipeline_mode = #tpu.pipeline_mode<synchronous>, transform_indices = @transform_5, window_bounds = array<i64: 8, 8>}, {pipeline_mode = #tpu.pipeline_mode<synchronous>, transform_indices = @transform_6, window_bounds = array<i64: 8, 1>}, {pipeline_mode = #tpu.pipeline_mode<synchronous>, transform_indices = @transform_7, window_bounds = array<i64: 8, 39>}, {transform_indices = @transform_8, window_bounds = array<i64: 1, 6, 42>}, {pipeline_mode = #tpu.pipeline_mode<synchronous>, transform_indices = @transform_9, window_bounds = array<i64: 2, 4>}, {pipeline_mode = #tpu.pipeline_mode<synchronous>, transform_indices = @transform_10, window_bounds = array<i64: 4, 12>}, {pipeline_mode = #tpu.pipeline_mode<synchronous>, transform_indices = @transform_11, window_bounds = array<i64: 4, 1>}, {pipeline_mode = #tpu.pipeline_mode<synchronous>, transform_indices = @transform_12, window_bounds = array<i64: 4, 4>}, {pipeline_mode = #tpu.pipeline_mode<synchronous>, transform_indices = @transform_13, window_bounds = array<i64: 4, 4>}, {pipeline_mode = #tpu.pipeline_mode<synchronous>, transform_indices = @transform_14, window_bounds = array<i64: 4, 1>}, {pipeline_mode = #tpu.pipeline_mode<synchronous>, transform_indices = @transform_15, window_bounds = array<i64: 4, 39>}, {pipeline_mode = #tpu.pipeline_mode<synchronous>, transform_indices = @transform_16, window_bounds = array<i64: 1, 39>}, {pipeline_mode = #tpu.pipeline_mode<synchronous>, transform_indices = @transform_17, window_bounds = array<i64: 39, 2>}, {pipeline_mode = #tpu.pipeline_mode<synchronous>, transform_indices = @transform_18, window_bounds = array<i64: 1, 1>}, {transform_indices = @transform_19, window_bounds = array<i64: 1, 1, 2>}]} {
    %c0 = arith.constant 0 : index
    %c0_0 = arith.constant 0 : index
    %0 = vector.load %arg17[%c0, %c0_0] : memref<1x39xf32, #tpu.memory_space<vmem>>, vector<1x39xf32>
    %c0_1 = arith.constant 0 : index
    %c0_2 = arith.constant 0 : index
    %c0_3 = arith.constant 0 : index
    %1 = vector.load %arg1[%c0_1, %c0_2, %c0_3] : memref<1x4x42xf32, #tpu.memory_space<vmem>>, vector<1x4x42xf32>
    %2 = vector.shape_cast %1 : vector<1x4x42xf32> to vector<4x42xf32>
    %c0_4 = arith.constant 0 : index
    %c0_5 = arith.constant 0 : index
    %3 = vector.load %arg2[%c0_4, %c0_5] : memref<4x4xf32, #tpu.memory_space<vmem>>, vector<4x4xf32>
    %c0_6 = arith.constant 0 : index
    %c0_7 = arith.constant 0 : index
    %4 = vector.load %arg3[%c0_6, %c0_7] : memref<8x16xf32, #tpu.memory_space<vmem>>, vector<8x16xf32>
    %c0_8 = arith.constant 0 : index
    %c0_9 = arith.constant 0 : index
    %5 = vector.load %arg4[%c0_8, %c0_9] : memref<8x1xf32, #tpu.memory_space<vmem>>, vector<8x1xf32>
    %c0_10 = arith.constant 0 : index
    %c0_11 = arith.constant 0 : index
    %6 = vector.load %arg5[%c0_10, %c0_11] : memref<8x4xf32, #tpu.memory_space<vmem>>, vector<8x4xf32>
    %c0_12 = arith.constant 0 : index
    %c0_13 = arith.constant 0 : index
    %7 = vector.load %arg6[%c0_12, %c0_13] : memref<8x8xf32, #tpu.memory_space<vmem>>, vector<8x8xf32>
    %c0_14 = arith.constant 0 : index
    %c0_15 = arith.constant 0 : index
    %8 = vector.load %arg7[%c0_14, %c0_15] : memref<8x1xf32, #tpu.memory_space<vmem>>, vector<8x1xf32>
    %c0_16 = arith.constant 0 : index
    %c0_17 = arith.constant 0 : index
    %9 = vector.load %arg8[%c0_16, %c0_17] : memref<8x39xf32, #tpu.memory_space<vmem>>, vector<8x39xf32>
    %cst = arith.constant 0.000000e+00 : f32
    %10 = vector.broadcast %cst : f32 to vector<8x39xf32>
    %cst_18 = arith.constant 0.000000e+00 : f32
    %11 = vector.broadcast %cst_18 : f32 to vector<4x39xf32>
    %12 = vector.extract_strided_slice %3 {offsets = [0, 0], sizes = [1, 1], strides = [1, 1]} : vector<4x4xf32> to vector<1x1xf32>
    %13 = vector.extract_strided_slice %2 {offsets = [0, 0], sizes = [4, 39], strides = [1, 1]} : vector<4x42xf32> to vector<4x39xf32>
    %14 = vector.broadcast %12 : vector<1x1xf32> to vector<4x39xf32>
    %15 = arith.mulf %14, %13 : vector<4x39xf32>
    %16 = arith.addf %11, %15 : vector<4x39xf32>
    %17 = vector.extract_strided_slice %3 {offsets = [0, 1], sizes = [1, 1], strides = [1, 1]} : vector<4x4xf32> to vector<1x1xf32>
    %18 = vector.extract_strided_slice %2 {offsets = [0, 1], sizes = [4, 39], strides = [1, 1]} : vector<4x42xf32> to vector<4x39xf32>
    %19 = vector.broadcast %17 : vector<1x1xf32> to vector<4x39xf32>
    %20 = arith.mulf %19, %18 : vector<4x39xf32>
    %21 = arith.addf %16, %20 : vector<4x39xf32>
    %22 = vector.extract_strided_slice %3 {offsets = [0, 2], sizes = [1, 1], strides = [1, 1]} : vector<4x4xf32> to vector<1x1xf32>
    %23 = vector.extract_strided_slice %2 {offsets = [0, 2], sizes = [4, 39], strides = [1, 1]} : vector<4x42xf32> to vector<4x39xf32>
    %24 = vector.broadcast %22 : vector<1x1xf32> to vector<4x39xf32>
    %25 = arith.mulf %24, %23 : vector<4x39xf32>
    %26 = arith.addf %21, %25 : vector<4x39xf32>
    %27 = vector.extract_strided_slice %3 {offsets = [0, 3], sizes = [1, 1], strides = [1, 1]} : vector<4x4xf32> to vector<1x1xf32>
    %28 = vector.extract_strided_slice %2 {offsets = [0, 3], sizes = [4, 39], strides = [1, 1]} : vector<4x42xf32> to vector<4x39xf32>
    %29 = vector.broadcast %27 : vector<1x1xf32> to vector<4x39xf32>
    %30 = arith.mulf %29, %28 : vector<4x39xf32>
    %31 = arith.addf %26, %30 : vector<4x39xf32>
    %32 = vector.extract_strided_slice %4 {offsets = [0, 0], sizes = [8, 4], strides = [1, 1]} : vector<8x16xf32> to vector<8x4xf32>
    %cst_19 = arith.constant dense<0.000000e+00> : vector<8x39xf32>
    %33 = tpu.matmul %32, %31, %cst_19 {dimension_numbers = #tpu.dot_dimension_numbers<[1], [0], [0], [1], [0, 0, 1, 1], [], []>} : vector<8x4xf32>, vector<4x39xf32>, vector<8x39xf32> -> vector<8x39xf32>
    %34 = arith.addf %10, %33 : vector<8x39xf32>
    %cst_20 = arith.constant 0.000000e+00 : f32
    %35 = vector.broadcast %cst_20 : f32 to vector<4x39xf32>
    %36 = vector.extract_strided_slice %3 {offsets = [1, 0], sizes = [1, 1], strides = [1, 1]} : vector<4x4xf32> to vector<1x1xf32>
    %37 = vector.extract_strided_slice %2 {offsets = [0, 0], sizes = [4, 39], strides = [1, 1]} : vector<4x42xf32> to vector<4x39xf32>
    %38 = vector.broadcast %36 : vector<1x1xf32> to vector<4x39xf32>
    %39 = arith.mulf %38, %37 : vector<4x39xf32>
    %40 = arith.addf %35, %39 : vector<4x39xf32>
    %41 = vector.extract_strided_slice %3 {offsets = [1, 1], sizes = [1, 1], strides = [1, 1]} : vector<4x4xf32> to vector<1x1xf32>
    %42 = vector.extract_strided_slice %2 {offsets = [0, 1], sizes = [4, 39], strides = [1, 1]} : vector<4x42xf32> to vector<4x39xf32>
    %43 = vector.broadcast %41 : vector<1x1xf32> to vector<4x39xf32>
    %44 = arith.mulf %43, %42 : vector<4x39xf32>
    %45 = arith.addf %40, %44 : vector<4x39xf32>
    %46 = vector.extract_strided_slice %3 {offsets = [1, 2], sizes = [1, 1], strides = [1, 1]} : vector<4x4xf32> to vector<1x1xf32>
    %47 = vector.extract_strided_slice %2 {offsets = [0, 2], sizes = [4, 39], strides = [1, 1]} : vector<4x42xf32> to vector<4x39xf32>
    %48 = vector.broadcast %46 : vector<1x1xf32> to vector<4x39xf32>
    %49 = arith.mulf %48, %47 : vector<4x39xf32>
    %50 = arith.addf %45, %49 : vector<4x39xf32>
    %51 = vector.extract_strided_slice %3 {offsets = [1, 3], sizes = [1, 1], strides = [1, 1]} : vector<4x4xf32> to vector<1x1xf32>
    %52 = vector.extract_strided_slice %2 {offsets = [0, 3], sizes = [4, 39], strides = [1, 1]} : vector<4x42xf32> to vector<4x39xf32>
    %53 = vector.broadcast %51 : vector<1x1xf32> to vector<4x39xf32>
    %54 = arith.mulf %53, %52 : vector<4x39xf32>
    %55 = arith.addf %50, %54 : vector<4x39xf32>
    %56 = vector.extract_strided_slice %4 {offsets = [0, 4], sizes = [8, 4], strides = [1, 1]} : vector<8x16xf32> to vector<8x4xf32>
    %cst_21 = arith.constant dense<0.000000e+00> : vector<8x39xf32>
    %57 = tpu.matmul %56, %55, %cst_21 {dimension_numbers = #tpu.dot_dimension_numbers<[1], [0], [0], [1], [0, 0, 1, 1], [], []>} : vector<8x4xf32>, vector<4x39xf32>, vector<8x39xf32> -> vector<8x39xf32>
    %58 = arith.addf %34, %57 : vector<8x39xf32>
    %cst_22 = arith.constant 0.000000e+00 : f32
    %59 = vector.broadcast %cst_22 : f32 to vector<4x39xf32>
    %60 = vector.extract_strided_slice %3 {offsets = [2, 0], sizes = [1, 1], strides = [1, 1]} : vector<4x4xf32> to vector<1x1xf32>
    %61 = vector.extract_strided_slice %2 {offsets = [0, 0], sizes = [4, 39], strides = [1, 1]} : vector<4x42xf32> to vector<4x39xf32>
    %62 = vector.broadcast %60 : vector<1x1xf32> to vector<4x39xf32>
    %63 = arith.mulf %62, %61 : vector<4x39xf32>
    %64 = arith.addf %59, %63 : vector<4x39xf32>
    %65 = vector.extract_strided_slice %3 {offsets = [2, 1], sizes = [1, 1], strides = [1, 1]} : vector<4x4xf32> to vector<1x1xf32>
    %66 = vector.extract_strided_slice %2 {offsets = [0, 1], sizes = [4, 39], strides = [1, 1]} : vector<4x42xf32> to vector<4x39xf32>
    %67 = vector.broadcast %65 : vector<1x1xf32> to vector<4x39xf32>
    %68 = arith.mulf %67, %66 : vector<4x39xf32>
    %69 = arith.addf %64, %68 : vector<4x39xf32>
    %70 = vector.extract_strided_slice %3 {offsets = [2, 2], sizes = [1, 1], strides = [1, 1]} : vector<4x4xf32> to vector<1x1xf32>
    %71 = vector.extract_strided_slice %2 {offsets = [0, 2], sizes = [4, 39], strides = [1, 1]} : vector<4x42xf32> to vector<4x39xf32>
    %72 = vector.broadcast %70 : vector<1x1xf32> to vector<4x39xf32>
    %73 = arith.mulf %72, %71 : vector<4x39xf32>
    %74 = arith.addf %69, %73 : vector<4x39xf32>
    %75 = vector.extract_strided_slice %3 {offsets = [2, 3], sizes = [1, 1], strides = [1, 1]} : vector<4x4xf32> to vector<1x1xf32>
    %76 = vector.extract_strided_slice %2 {offsets = [0, 3], sizes = [4, 39], strides = [1, 1]} : vector<4x42xf32> to vector<4x39xf32>
    %77 = vector.broadcast %75 : vector<1x1xf32> to vector<4x39xf32>
    %78 = arith.mulf %77, %76 : vector<4x39xf32>
    %79 = arith.addf %74, %78 : vector<4x39xf32>
    %80 = vector.extract_strided_slice %4 {offsets = [0, 8], sizes = [8, 4], strides = [1, 1]} : vector<8x16xf32> to vector<8x4xf32>
    %cst_23 = arith.constant dense<0.000000e+00> : vector<8x39xf32>
    %81 = tpu.matmul %80, %79, %cst_23 {dimension_numbers = #tpu.dot_dimension_numbers<[1], [0], [0], [1], [0, 0, 1, 1], [], []>} : vector<8x4xf32>, vector<4x39xf32>, vector<8x39xf32> -> vector<8x39xf32>
    %82 = arith.addf %58, %81 : vector<8x39xf32>
    %cst_24 = arith.constant 0.000000e+00 : f32
    %83 = vector.broadcast %cst_24 : f32 to vector<4x39xf32>
    %84 = vector.extract_strided_slice %3 {offsets = [3, 0], sizes = [1, 1], strides = [1, 1]} : vector<4x4xf32> to vector<1x1xf32>
    %85 = vector.extract_strided_slice %2 {offsets = [0, 0], sizes = [4, 39], strides = [1, 1]} : vector<4x42xf32> to vector<4x39xf32>
    %86 = vector.broadcast %84 : vector<1x1xf32> to vector<4x39xf32>
    %87 = arith.mulf %86, %85 : vector<4x39xf32>
    %88 = arith.addf %83, %87 : vector<4x39xf32>
    %89 = vector.extract_strided_slice %3 {offsets = [3, 1], sizes = [1, 1], strides = [1, 1]} : vector<4x4xf32> to vector<1x1xf32>
    %90 = vector.extract_strided_slice %2 {offsets = [0, 1], sizes = [4, 39], strides = [1, 1]} : vector<4x42xf32> to vector<4x39xf32>
    %91 = vector.broadcast %89 : vector<1x1xf32> to vector<4x39xf32>
    %92 = arith.mulf %91, %90 : vector<4x39xf32>
    %93 = arith.addf %88, %92 : vector<4x39xf32>
    %94 = vector.extract_strided_slice %3 {offsets = [3, 2], sizes = [1, 1], strides = [1, 1]} : vector<4x4xf32> to vector<1x1xf32>
    %95 = vector.extract_strided_slice %2 {offsets = [0, 2], sizes = [4, 39], strides = [1, 1]} : vector<4x42xf32> to vector<4x39xf32>
    %96 = vector.broadcast %94 : vector<1x1xf32> to vector<4x39xf32>
    %97 = arith.mulf %96, %95 : vector<4x39xf32>
    %98 = arith.addf %93, %97 : vector<4x39xf32>
    %99 = vector.extract_strided_slice %3 {offsets = [3, 3], sizes = [1, 1], strides = [1, 1]} : vector<4x4xf32> to vector<1x1xf32>
    %100 = vector.extract_strided_slice %2 {offsets = [0, 3], sizes = [4, 39], strides = [1, 1]} : vector<4x42xf32> to vector<4x39xf32>
    %101 = vector.broadcast %99 : vector<1x1xf32> to vector<4x39xf32>
    %102 = arith.mulf %101, %100 : vector<4x39xf32>
    %103 = arith.addf %98, %102 : vector<4x39xf32>
    %104 = vector.extract_strided_slice %4 {offsets = [0, 12], sizes = [8, 4], strides = [1, 1]} : vector<8x16xf32> to vector<8x4xf32>
    %cst_25 = arith.constant dense<0.000000e+00> : vector<8x39xf32>
    %105 = tpu.matmul %104, %103, %cst_25 {dimension_numbers = #tpu.dot_dimension_numbers<[1], [0], [0], [1], [0, 0, 1, 1], [], []>} : vector<8x4xf32>, vector<4x39xf32>, vector<8x39xf32> -> vector<8x39xf32>
    %106 = arith.addf %82, %105 : vector<8x39xf32>
    %107 = vector.broadcast %5 : vector<8x1xf32> to vector<8x39xf32>
    %108 = arith.addf %106, %107 : vector<8x39xf32>
    %cst_26 = arith.constant 0.000000e+00 : f32
    %109 = vector.broadcast %cst_26 : f32 to vector<8x39xf32>
    %110 = arith.cmpf ogt, %108, %109 : vector<8x39xf32>
    %cst_27 = arith.constant 0.000000e+00 : f32
    %111 = vector.broadcast %cst_27 : f32 to vector<8x39xf32>
    %112 = arith.minimumf %108, %111 : vector<8x39xf32>
    %113 = math.exp %112 : vector<8x39xf32>
    %cst_28 = arith.constant 1.000000e+00 : f32
    %114 = vector.broadcast %cst_28 : f32 to vector<8x39xf32>
    %115 = arith.subf %113, %114 : vector<8x39xf32>
    %116 = arith.select %110, %108, %115 : vector<8x39xi1>, vector<8x39xf32>
    %117 = vector.broadcast %0 : vector<1x39xf32> to vector<8x39xf32>
    %118 = arith.mulf %116, %117 : vector<8x39xf32>
    %cst_29 = arith.constant 0.000000e+00 : f32
    %119 = vector.broadcast %cst_29 : f32 to vector<8x42xf32>
    %c0_30 = arith.constant 0 : index
    %c0_31 = arith.constant 0 : index
    %120 = vector.load %arg21[%c0_30, %c0_31] : memref<8x42xf32, #tpu.memory_space<vmem>>, vector<8x42xf32>
    tpu.vector_store %arg21[%c0_30, %c0_31], %119 {strides = array<i32>} : memref<8x42xf32, #tpu.memory_space<vmem>>, vector<8x42xf32>,
    %c0_32 = arith.constant 0 : index
    %c2 = arith.constant 2 : index
    %121 = vector.load %arg21[%c0_32, %c2] : memref<8x42xf32, #tpu.memory_space<vmem>>, vector<8x39xf32>
    tpu.vector_store %arg21[%c0_32, %c2], %118 {strides = array<i32>} : memref<8x42xf32, #tpu.memory_space<vmem>>, vector<8x39xf32>,
    %c0_33 = arith.constant 0 : index
    %c0_34 = arith.constant 0 : index
    %122 = vector.load %arg21[%c0_33, %c0_34] : memref<8x42xf32, #tpu.memory_space<vmem>>, vector<8x42xf32>
    %cst_35 = arith.constant 0.000000e+00 : f32
    %123 = vector.broadcast %cst_35 : f32 to vector<8x39xf32>
    %124 = vector.extract_strided_slice %6 {offsets = [0, 0], sizes = [8, 1], strides = [1, 1]} : vector<8x4xf32> to vector<8x1xf32>
    %125 = vector.extract_strided_slice %122 {offsets = [0, 0], sizes = [8, 39], strides = [1, 1]} : vector<8x42xf32> to vector<8x39xf32>
    %126 = vector.broadcast %124 : vector<8x1xf32> to vector<8x39xf32>
    %127 = arith.mulf %126, %125 : vector<8x39xf32>
    %128 = arith.addf %123, %127 : vector<8x39xf32>
    %129 = vector.extract_strided_slice %6 {offsets = [0, 1], sizes = [8, 1], strides = [1, 1]} : vector<8x4xf32> to vector<8x1xf32>
    %130 = vector.extract_strided_slice %122 {offsets = [0, 1], sizes = [8, 39], strides = [1, 1]} : vector<8x42xf32> to vector<8x39xf32>
    %131 = vector.broadcast %129 : vector<8x1xf32> to vector<8x39xf32>
    %132 = arith.mulf %131, %130 : vector<8x39xf32>
    %133 = arith.addf %128, %132 : vector<8x39xf32>
    %134 = vector.extract_strided_slice %6 {offsets = [0, 2], sizes = [8, 1], strides = [1, 1]} : vector<8x4xf32> to vector<8x1xf32>
    %135 = vector.extract_strided_slice %122 {offsets = [0, 2], sizes = [8, 39], strides = [1, 1]} : vector<8x42xf32> to vector<8x39xf32>
    %136 = vector.broadcast %134 : vector<8x1xf32> to vector<8x39xf32>
    %137 = arith.mulf %136, %135 : vector<8x39xf32>
    %138 = arith.addf %133, %137 : vector<8x39xf32>
    %139 = vector.extract_strided_slice %6 {offsets = [0, 3], sizes = [8, 1], strides = [1, 1]} : vector<8x4xf32> to vector<8x1xf32>
    %140 = vector.extract_strided_slice %122 {offsets = [0, 3], sizes = [8, 39], strides = [1, 1]} : vector<8x42xf32> to vector<8x39xf32>
    %141 = vector.broadcast %139 : vector<8x1xf32> to vector<8x39xf32>
    %142 = arith.mulf %141, %140 : vector<8x39xf32>
    %143 = arith.addf %138, %142 : vector<8x39xf32>
    %cst_36 = arith.constant dense<0.000000e+00> : vector<8x39xf32>
    %144 = tpu.matmul %7, %143, %cst_36 {dimension_numbers = #tpu.dot_dimension_numbers<[1], [0], [0], [1], [0, 0, 1, 1], [], []>} : vector<8x8xf32>, vector<8x39xf32>, vector<8x39xf32> -> vector<8x39xf32>
    %145 = vector.broadcast %8 : vector<8x1xf32> to vector<8x39xf32>
    %146 = arith.addf %144, %145 : vector<8x39xf32>
    %cst_37 = arith.constant 0.000000e+00 : f32
    %147 = vector.broadcast %cst_37 : f32 to vector<8x39xf32>
    %148 = arith.cmpf ogt, %146, %147 : vector<8x39xf32>
    %cst_38 = arith.constant 0.000000e+00 : f32
    %149 = vector.broadcast %cst_38 : f32 to vector<8x39xf32>
    %150 = arith.minimumf %146, %149 : vector<8x39xf32>
    %151 = math.exp %150 : vector<8x39xf32>
    %cst_39 = arith.constant 1.000000e+00 : f32
    %152 = vector.broadcast %cst_39 : f32 to vector<8x39xf32>
    %153 = arith.subf %151, %152 : vector<8x39xf32>
    %154 = arith.select %148, %146, %153 : vector<8x39xi1>, vector<8x39xf32>
    %155 = arith.mulf %154, %9 : vector<8x39xf32>
    %cst_40 = arith.constant dense<0.000000e+00> : vector<39xf32>
    %156 = vector.multi_reduction <add>, %155, %cst_40 [0] : vector<8x39xf32> to vector<39xf32>
    %157 = vector.shape_cast %156 : vector<39xf32> to vector<1x39xf32>
    %c0_41 = arith.constant 0 : index
    %c0_42 = arith.constant 0 : index
    %c0_43 = arith.constant 0 : index
    %158 = vector.load %arg9[%c0_41, %c0_42, %c0_43] : memref<1x6x42xf32, #tpu.memory_space<vmem>>, vector<1x6x42xf32>
    %159 = vector.shape_cast %158 : vector<1x6x42xf32> to vector<6x42xf32>
    %c0_44 = arith.constant 0 : index
    %c0_45 = arith.constant 0 : index
    %160 = vector.load %arg10[%c0_44, %c0_45] : memref<2x4xf32, #tpu.memory_space<vmem>>, vector<2x4xf32>
    %c0_46 = arith.constant 0 : index
    %c0_47 = arith.constant 0 : index
    %161 = vector.load %arg11[%c0_46, %c0_47] : memref<4x12xf32, #tpu.memory_space<vmem>>, vector<4x12xf32>
    %c0_48 = arith.constant 0 : index
    %c0_49 = arith.constant 0 : index
    %162 = vector.load %arg12[%c0_48, %c0_49] : memref<4x1xf32, #tpu.memory_space<vmem>>, vector<4x1xf32>
    %c0_50 = arith.constant 0 : index
    %c0_51 = arith.constant 0 : index
    %163 = vector.load %arg13[%c0_50, %c0_51] : memref<4x4xf32, #tpu.memory_space<vmem>>, vector<4x4xf32>
    %c0_52 = arith.constant 0 : index
    %c0_53 = arith.constant 0 : index
    %164 = vector.load %arg14[%c0_52, %c0_53] : memref<4x4xf32, #tpu.memory_space<vmem>>, vector<4x4xf32>
    %c0_54 = arith.constant 0 : index
    %c0_55 = arith.constant 0 : index
    %165 = vector.load %arg15[%c0_54, %c0_55] : memref<4x1xf32, #tpu.memory_space<vmem>>, vector<4x1xf32>
    %c0_56 = arith.constant 0 : index
    %c0_57 = arith.constant 0 : index
    %166 = vector.load %arg16[%c0_56, %c0_57] : memref<4x39xf32, #tpu.memory_space<vmem>>, vector<4x39xf32>
    %cst_58 = arith.constant 0.000000e+00 : f32
    %167 = vector.broadcast %cst_58 : f32 to vector<4x39xf32>
    %cst_59 = arith.constant 0.000000e+00 : f32
    %168 = vector.broadcast %cst_59 : f32 to vector<6x39xf32>
    %169 = vector.extract_strided_slice %160 {offsets = [0, 0], sizes = [1, 1], strides = [1, 1]} : vector<2x4xf32> to vector<1x1xf32>
    %170 = vector.extract_strided_slice %159 {offsets = [0, 0], sizes = [6, 39], strides = [1, 1]} : vector<6x42xf32> to vector<6x39xf32>
    %171 = vector.broadcast %169 : vector<1x1xf32> to vector<6x39xf32>
    %172 = arith.mulf %171, %170 : vector<6x39xf32>
    %173 = arith.addf %168, %172 : vector<6x39xf32>
    %174 = vector.extract_strided_slice %160 {offsets = [0, 1], sizes = [1, 1], strides = [1, 1]} : vector<2x4xf32> to vector<1x1xf32>
    %175 = vector.extract_strided_slice %159 {offsets = [0, 1], sizes = [6, 39], strides = [1, 1]} : vector<6x42xf32> to vector<6x39xf32>
    %176 = vector.broadcast %174 : vector<1x1xf32> to vector<6x39xf32>
    %177 = arith.mulf %176, %175 : vector<6x39xf32>
    %178 = arith.addf %173, %177 : vector<6x39xf32>
    %179 = vector.extract_strided_slice %160 {offsets = [0, 2], sizes = [1, 1], strides = [1, 1]} : vector<2x4xf32> to vector<1x1xf32>
    %180 = vector.extract_strided_slice %159 {offsets = [0, 2], sizes = [6, 39], strides = [1, 1]} : vector<6x42xf32> to vector<6x39xf32>
    %181 = vector.broadcast %179 : vector<1x1xf32> to vector<6x39xf32>
    %182 = arith.mulf %181, %180 : vector<6x39xf32>
    %183 = arith.addf %178, %182 : vector<6x39xf32>
    %184 = vector.extract_strided_slice %160 {offsets = [0, 3], sizes = [1, 1], strides = [1, 1]} : vector<2x4xf32> to vector<1x1xf32>
    %185 = vector.extract_strided_slice %159 {offsets = [0, 3], sizes = [6, 39], strides = [1, 1]} : vector<6x42xf32> to vector<6x39xf32>
    %186 = vector.broadcast %184 : vector<1x1xf32> to vector<6x39xf32>
    %187 = arith.mulf %186, %185 : vector<6x39xf32>
    %188 = arith.addf %183, %187 : vector<6x39xf32>
    %189 = vector.extract_strided_slice %161 {offsets = [0, 0], sizes = [4, 6], strides = [1, 1]} : vector<4x12xf32> to vector<4x6xf32>
    %cst_60 = arith.constant dense<0.000000e+00> : vector<4x39xf32>
    %190 = tpu.matmul %189, %188, %cst_60 {dimension_numbers = #tpu.dot_dimension_numbers<[1], [0], [0], [1], [0, 0, 1, 1], [], []>} : vector<4x6xf32>, vector<6x39xf32>, vector<4x39xf32> -> vector<4x39xf32>
    %191 = arith.addf %167, %190 : vector<4x39xf32>
    %cst_61 = arith.constant 0.000000e+00 : f32
    %192 = vector.broadcast %cst_61 : f32 to vector<6x39xf32>
    %193 = vector.extract_strided_slice %160 {offsets = [1, 0], sizes = [1, 1], strides = [1, 1]} : vector<2x4xf32> to vector<1x1xf32>
    %194 = vector.extract_strided_slice %159 {offsets = [0, 0], sizes = [6, 39], strides = [1, 1]} : vector<6x42xf32> to vector<6x39xf32>
    %195 = vector.broadcast %193 : vector<1x1xf32> to vector<6x39xf32>
    %196 = arith.mulf %195, %194 : vector<6x39xf32>
    %197 = arith.addf %192, %196 : vector<6x39xf32>
    %198 = vector.extract_strided_slice %160 {offsets = [1, 1], sizes = [1, 1], strides = [1, 1]} : vector<2x4xf32> to vector<1x1xf32>
    %199 = vector.extract_strided_slice %159 {offsets = [0, 1], sizes = [6, 39], strides = [1, 1]} : vector<6x42xf32> to vector<6x39xf32>
    %200 = vector.broadcast %198 : vector<1x1xf32> to vector<6x39xf32>
    %201 = arith.mulf %200, %199 : vector<6x39xf32>
    %202 = arith.addf %197, %201 : vector<6x39xf32>
    %203 = vector.extract_strided_slice %160 {offsets = [1, 2], sizes = [1, 1], strides = [1, 1]} : vector<2x4xf32> to vector<1x1xf32>
    %204 = vector.extract_strided_slice %159 {offsets = [0, 2], sizes = [6, 39], strides = [1, 1]} : vector<6x42xf32> to vector<6x39xf32>
    %205 = vector.broadcast %203 : vector<1x1xf32> to vector<6x39xf32>
    %206 = arith.mulf %205, %204 : vector<6x39xf32>
    %207 = arith.addf %202, %206 : vector<6x39xf32>
    %208 = vector.extract_strided_slice %160 {offsets = [1, 3], sizes = [1, 1], strides = [1, 1]} : vector<2x4xf32> to vector<1x1xf32>
    %209 = vector.extract_strided_slice %159 {offsets = [0, 3], sizes = [6, 39], strides = [1, 1]} : vector<6x42xf32> to vector<6x39xf32>
    %210 = vector.broadcast %208 : vector<1x1xf32> to vector<6x39xf32>
    %211 = arith.mulf %210, %209 : vector<6x39xf32>
    %212 = arith.addf %207, %211 : vector<6x39xf32>
    %213 = vector.extract_strided_slice %161 {offsets = [0, 6], sizes = [4, 6], strides = [1, 1]} : vector<4x12xf32> to vector<4x6xf32>
    %cst_62 = arith.constant dense<0.000000e+00> : vector<4x39xf32>
    %214 = tpu.matmul %213, %212, %cst_62 {dimension_numbers = #tpu.dot_dimension_numbers<[1], [0], [0], [1], [0, 0, 1, 1], [], []>} : vector<4x6xf32>, vector<6x39xf32>, vector<4x39xf32> -> vector<4x39xf32>
    %215 = arith.addf %191, %214 : vector<4x39xf32>
    %216 = vector.broadcast %162 : vector<4x1xf32> to vector<4x39xf32>
    %217 = arith.addf %215, %216 : vector<4x39xf32>
    %cst_63 = arith.constant 0.000000e+00 : f32
    %218 = vector.broadcast %cst_63 : f32 to vector<4x39xf32>
    %219 = arith.cmpf ogt, %217, %218 : vector<4x39xf32>
    %cst_64 = arith.constant 0.000000e+00 : f32
    %220 = vector.broadcast %cst_64 : f32 to vector<4x39xf32>
    %221 = arith.minimumf %217, %220 : vector<4x39xf32>
    %222 = math.exp %221 : vector<4x39xf32>
    %cst_65 = arith.constant 1.000000e+00 : f32
    %223 = vector.broadcast %cst_65 : f32 to vector<4x39xf32>
    %224 = arith.subf %222, %223 : vector<4x39xf32>
    %225 = arith.select %219, %217, %224 : vector<4x39xi1>, vector<4x39xf32>
    %226 = vector.broadcast %0 : vector<1x39xf32> to vector<4x39xf32>
    %227 = arith.mulf %225, %226 : vector<4x39xf32>
    %cst_66 = arith.constant 0.000000e+00 : f32
    %228 = vector.broadcast %cst_66 : f32 to vector<4x42xf32>
    %c0_67 = arith.constant 0 : index
    %c0_68 = arith.constant 0 : index
    %229 = vector.load %arg22[%c0_67, %c0_68] : memref<4x42xf32, #tpu.memory_space<vmem>>, vector<4x42xf32>
    tpu.vector_store %arg22[%c0_67, %c0_68], %228 {strides = array<i32>} : memref<4x42xf32, #tpu.memory_space<vmem>>, vector<4x42xf32>,
    %c0_69 = arith.constant 0 : index
    %c2_70 = arith.constant 2 : index
    %230 = vector.load %arg22[%c0_69, %c2_70] : memref<4x42xf32, #tpu.memory_space<vmem>>, vector<4x39xf32>
    tpu.vector_store %arg22[%c0_69, %c2_70], %227 {strides = array<i32>} : memref<4x42xf32, #tpu.memory_space<vmem>>, vector<4x39xf32>,
    %c0_71 = arith.constant 0 : index
    %c0_72 = arith.constant 0 : index
    %231 = vector.load %arg22[%c0_71, %c0_72] : memref<4x42xf32, #tpu.memory_space<vmem>>, vector<4x42xf32>
    %cst_73 = arith.constant 0.000000e+00 : f32
    %232 = vector.broadcast %cst_73 : f32 to vector<4x39xf32>
    %233 = vector.extract_strided_slice %163 {offsets = [0, 0], sizes = [4, 1], strides = [1, 1]} : vector<4x4xf32> to vector<4x1xf32>
    %234 = vector.extract_strided_slice %231 {offsets = [0, 0], sizes = [4, 39], strides = [1, 1]} : vector<4x42xf32> to vector<4x39xf32>
    %235 = vector.broadcast %233 : vector<4x1xf32> to vector<4x39xf32>
    %236 = arith.mulf %235, %234 : vector<4x39xf32>
    %237 = arith.addf %232, %236 : vector<4x39xf32>
    %238 = vector.extract_strided_slice %163 {offsets = [0, 1], sizes = [4, 1], strides = [1, 1]} : vector<4x4xf32> to vector<4x1xf32>
    %239 = vector.extract_strided_slice %231 {offsets = [0, 1], sizes = [4, 39], strides = [1, 1]} : vector<4x42xf32> to vector<4x39xf32>
    %240 = vector.broadcast %238 : vector<4x1xf32> to vector<4x39xf32>
    %241 = arith.mulf %240, %239 : vector<4x39xf32>
    %242 = arith.addf %237, %241 : vector<4x39xf32>
    %243 = vector.extract_strided_slice %163 {offsets = [0, 2], sizes = [4, 1], strides = [1, 1]} : vector<4x4xf32> to vector<4x1xf32>
    %244 = vector.extract_strided_slice %231 {offsets = [0, 2], sizes = [4, 39], strides = [1, 1]} : vector<4x42xf32> to vector<4x39xf32>
    %245 = vector.broadcast %243 : vector<4x1xf32> to vector<4x39xf32>
    %246 = arith.mulf %245, %244 : vector<4x39xf32>
    %247 = arith.addf %242, %246 : vector<4x39xf32>
    %248 = vector.extract_strided_slice %163 {offsets = [0, 3], sizes = [4, 1], strides = [1, 1]} : vector<4x4xf32> to vector<4x1xf32>
    %249 = vector.extract_strided_slice %231 {offsets = [0, 3], sizes = [4, 39], strides = [1, 1]} : vector<4x42xf32> to vector<4x39xf32>
    %250 = vector.broadcast %248 : vector<4x1xf32> to vector<4x39xf32>
    %251 = arith.mulf %250, %249 : vector<4x39xf32>
    %252 = arith.addf %247, %251 : vector<4x39xf32>
    %cst_74 = arith.constant dense<0.000000e+00> : vector<4x39xf32>
    %253 = tpu.matmul %164, %252, %cst_74 {dimension_numbers = #tpu.dot_dimension_numbers<[1], [0], [0], [1], [0, 0, 1, 1], [], []>} : vector<4x4xf32>, vector<4x39xf32>, vector<4x39xf32> -> vector<4x39xf32>
    %254 = vector.broadcast %165 : vector<4x1xf32> to vector<4x39xf32>
    %255 = arith.addf %253, %254 : vector<4x39xf32>
    %cst_75 = arith.constant 0.000000e+00 : f32
    %256 = vector.broadcast %cst_75 : f32 to vector<4x39xf32>
    %257 = arith.cmpf ogt, %255, %256 : vector<4x39xf32>
    %cst_76 = arith.constant 0.000000e+00 : f32
    %258 = vector.broadcast %cst_76 : f32 to vector<4x39xf32>
    %259 = arith.minimumf %255, %258 : vector<4x39xf32>
    %260 = math.exp %259 : vector<4x39xf32>
    %cst_77 = arith.constant 1.000000e+00 : f32
    %261 = vector.broadcast %cst_77 : f32 to vector<4x39xf32>
    %262 = arith.subf %260, %261 : vector<4x39xf32>
    %263 = arith.select %257, %255, %262 : vector<4x39xi1>, vector<4x39xf32>
    %264 = arith.mulf %263, %166 : vector<4x39xf32>
    %cst_78 = arith.constant dense<0.000000e+00> : vector<39xf32>
    %265 = vector.multi_reduction <add>, %264, %cst_78 [0] : vector<4x39xf32> to vector<39xf32>
    %266 = vector.shape_cast %265 : vector<39xf32> to vector<1x39xf32>
    %267 = arith.addf %157, %266 : vector<1x39xf32>
    %c0_79 = arith.constant 0 : index
    %c0_80 = arith.constant 0 : index
    %268 = vector.load %arg18[%c0_79, %c0_80] : memref<39x2xf32, #tpu.memory_space<vmem>>, vector<39x2xf32>
    %cst_81 = arith.constant dense<0.000000e+00> : vector<1x2xf32>
    %269 = tpu.matmul %267, %268, %cst_81 {dimension_numbers = #tpu.dot_dimension_numbers<[1], [0], [0], [1], [0, 0, 1, 1], [], []>} : vector<1x39xf32>, vector<39x2xf32>, vector<1x2xf32> -> vector<1x2xf32>
    %c0_82 = arith.constant 0 : index
    %c0_83 = arith.constant 0 : index
    %270 = vector.load %arg19[%c0_82, %c0_83] : memref<1x1xf32, #tpu.memory_space<vmem>>, vector<1x1xf32>
    %271 = vector.broadcast %270 : vector<1x1xf32> to vector<1x2xf32>
    %272 = arith.addf %269, %271 : vector<1x2xf32>
    %c0_84 = arith.constant 0 : index
    %c0_85 = arith.constant 0 : index
    %c0_86 = arith.constant 0 : index
    %273 = vector.load %arg20[%c0_84, %c0_85, %c0_86] : memref<1x1x2xf32, #tpu.memory_space<vmem>>, vector<1x1x2xf32>
    %274 = vector.shape_cast %273 : vector<1x1x2xf32> to vector<1x2xf32>
    %275 = vector.shape_cast %272 : vector<1x2xf32> to vector<1x1x2xf32>
    tpu.vector_store %arg20[%c0_84, %c0_85, %c0_86], %275 {strides = array<i32>} : memref<1x1x2xf32, #tpu.memory_space<vmem>>, vector<1x1x2xf32>,
    return
  }
  func.func @transform_0(%arg0: i32) -> (i32, i32, i32) {
    %c0_i32 = arith.constant 0 : i32
    %c0_i32_0 = arith.constant 0 : i32
    %c0_i32_1 = arith.constant 0 : i32
    return %arg0, %c0_i32, %c0_i32_0 : i32, i32, i32
  }
  func.func @transform_1(%arg0: i32) -> (i32, i32) {
    %c0_i32 = arith.constant 0 : i32
    %c0_i32_0 = arith.constant 0 : i32
    %c0_i32_1 = arith.constant 0 : i32
    return %c0_i32, %c0_i32_0 : i32, i32
  }
  func.func @transform_2(%arg0: i32) -> (i32, i32) {
    %c0_i32 = arith.constant 0 : i32
    %c0_i32_0 = arith.constant 0 : i32
    %c0_i32_1 = arith.constant 0 : i32
    return %c0_i32, %c0_i32_0 : i32, i32
  }
  func.func @transform_3(%arg0: i32) -> (i32, i32) {
    %c0_i32 = arith.constant 0 : i32
    %c0_i32_0 = arith.constant 0 : i32
    %c0_i32_1 = arith.constant 0 : i32
    return %c0_i32, %c0_i32_0 : i32, i32
  }
  func.func @transform_4(%arg0: i32) -> (i32, i32) {
    %c0_i32 = arith.constant 0 : i32
    %c0_i32_0 = arith.constant 0 : i32
    %c0_i32_1 = arith.constant 0 : i32
    return %c0_i32, %c0_i32_0 : i32, i32
  }
  func.func @transform_5(%arg0: i32) -> (i32, i32) {
    %c0_i32 = arith.constant 0 : i32
    %c0_i32_0 = arith.constant 0 : i32
    %c0_i32_1 = arith.constant 0 : i32
    return %c0_i32, %c0_i32_0 : i32, i32
  }
  func.func @transform_6(%arg0: i32) -> (i32, i32) {
    %c0_i32 = arith.constant 0 : i32
    %c0_i32_0 = arith.constant 0 : i32
    %c0_i32_1 = arith.constant 0 : i32
    return %c0_i32, %c0_i32_0 : i32, i32
  }
  func.func @transform_7(%arg0: i32) -> (i32, i32) {
    %c0_i32 = arith.constant 0 : i32
    %c0_i32_0 = arith.constant 0 : i32
    %c0_i32_1 = arith.constant 0 : i32
    return %c0_i32, %c0_i32_0 : i32, i32
  }
  func.func @transform_8(%arg0: i32) -> (i32, i32, i32) {
    %c0_i32 = arith.constant 0 : i32
    %c0_i32_0 = arith.constant 0 : i32
    %c0_i32_1 = arith.constant 0 : i32
    return %arg0, %c0_i32, %c0_i32_0 : i32, i32, i32
  }
  func.func @transform_9(%arg0: i32) -> (i32, i32) {
    %c0_i32 = arith.constant 0 : i32
    %c0_i32_0 = arith.constant 0 : i32
    %c0_i32_1 = arith.constant 0 : i32
    return %c0_i32, %c0_i32_0 : i32, i32
  }
  func.func @transform_10(%arg0: i32) -> (i32, i32) {
    %c0_i32 = arith.constant 0 : i32
    %c0_i32_0 = arith.constant 0 : i32
    %c0_i32_1 = arith.constant 0 : i32
    return %c0_i32, %c0_i32_0 : i32, i32
  }
  func.func @transform_11(%arg0: i32) -> (i32, i32) {
    %c0_i32 = arith.constant 0 : i32
    %c0_i32_0 = arith.constant 0 : i32
    %c0_i32_1 = arith.constant 0 : i32
    return %c0_i32, %c0_i32_0 : i32, i32
  }
  func.func @transform_12(%arg0: i32) -> (i32, i32) {
    %c0_i32 = arith.constant 0 : i32
    %c0_i32_0 = arith.constant 0 : i32
    %c0_i32_1 = arith.constant 0 : i32
    return %c0_i32, %c0_i32_0 : i32, i32
  }
  func.func @transform_13(%arg0: i32) -> (i32, i32) {
    %c0_i32 = arith.constant 0 : i32
    %c0_i32_0 = arith.constant 0 : i32
    %c0_i32_1 = arith.constant 0 : i32
    return %c0_i32, %c0_i32_0 : i32, i32
  }
  func.func @transform_14(%arg0: i32) -> (i32, i32) {
    %c0_i32 = arith.constant 0 : i32
    %c0_i32_0 = arith.constant 0 : i32
    %c0_i32_1 = arith.constant 0 : i32
    return %c0_i32, %c0_i32_0 : i32, i32
  }
  func.func @transform_15(%arg0: i32) -> (i32, i32) {
    %c0_i32 = arith.constant 0 : i32
    %c0_i32_0 = arith.constant 0 : i32
    %c0_i32_1 = arith.constant 0 : i32
    return %c0_i32, %c0_i32_0 : i32, i32
  }
  func.func @transform_16(%arg0: i32) -> (i32, i32) {
    %c0_i32 = arith.constant 0 : i32
    %c0_i32_0 = arith.constant 0 : i32
    %c0_i32_1 = arith.constant 0 : i32
    return %c0_i32, %c0_i32_0 : i32, i32
  }
  func.func @transform_17(%arg0: i32) -> (i32, i32) {
    %c0_i32 = arith.constant 0 : i32
    %c0_i32_0 = arith.constant 0 : i32
    %c0_i32_1 = arith.constant 0 : i32
    return %c0_i32, %c0_i32_0 : i32, i32
  }
  func.func @transform_18(%arg0: i32) -> (i32, i32) {
    %c0_i32 = arith.constant 0 : i32
    %c0_i32_0 = arith.constant 0 : i32
    %c0_i32_1 = arith.constant 0 : i32
    return %c0_i32, %c0_i32_0 : i32, i32
  }
  func.func @transform_19(%arg0: i32) -> (i32, i32, i32) {
    %c0_i32 = arith.constant 0 : i32
    %c0_i32_0 = arith.constant 0 : i32
    %c0_i32_1 = arith.constant 0 : i32
    return %arg0, %c0_i32, %c0_i32_0 : i32, i32, i32
  }
}

</mosaic_0001>

<llo_original>
// kernel: tpu_custom_call.1
$region0: #{tpu_custom_call.1}
  #allocation0 [shape = 'u32[]', space=smem, size = 0x4, offset = 0x4, fixed_abs, tag = 'smem constant byte address 0x4 - core index']
  #allocation1 [shape = 'u32[144,128]{1,0:T(1,128)}', space=vmem, size = 0x12000, scoped, tag = 'internal scratch']
  #allocation2 [shape = 'f32[8,42]{1,0:T(8,128)}', space=vmem, size = 0x1000, scoped, tag = 'scratch operand']
  #allocation3 [shape = 'f32[4,42]{1,0:T(4,128)}', space=vmem, size = 0x800, scoped, tag = 'scratch operand']
  #allocation4 [shape = 'f32[1,1]{1,0:T(1,128)S(1)}', space=vmem, size = 0x200, scoped, tag = 'scoped memory for tpu_custom_call.1']
  %s0 = inlined_call_operand.vmem [shape: f32[1,4,42], index: 0, kind: input, shape index: {}]
  %s1 = inlined_call_operand.vmem [shape: f32[4,4], index: 1, kind: input, shape index: {}]
  %s2 = inlined_call_operand.vmem [shape: f32[8,16], index: 2, kind: input, shape index: {}]
  %s3 = inlined_call_operand.vmem [shape: f32[8,1], index: 3, kind: input, shape index: {}]
  %s4 = inlined_call_operand.vmem [shape: f32[8,4], index: 4, kind: input, shape index: {}]
  %s5 = inlined_call_operand.vmem [shape: f32[8,8], index: 5, kind: input, shape index: {}]
  %s6 = inlined_call_operand.vmem [shape: f32[8,1], index: 6, kind: input, shape index: {}]
  %s7 = inlined_call_operand.vmem [shape: f32[8,39], index: 7, kind: input, shape index: {}]
  %s8 = inlined_call_operand.vmem [shape: f32[1,6,42], index: 8, kind: input, shape index: {}]
  %s9 = inlined_call_operand.vmem [shape: f32[2,4], index: 9, kind: input, shape index: {}]
  %s10 = inlined_call_operand.vmem [shape: f32[4,12], index: 10, kind: input, shape index: {}]
  %s11 = inlined_call_operand.vmem [shape: f32[4,1], index: 11, kind: input, shape index: {}]
  %s12 = inlined_call_operand.vmem [shape: f32[4,4], index: 12, kind: input, shape index: {}]
  %s13 = inlined_call_operand.vmem [shape: f32[4,4], index: 13, kind: input, shape index: {}]
  %s14 = inlined_call_operand.vmem [shape: f32[4,1], index: 14, kind: input, shape index: {}]
  %s15 = inlined_call_operand.vmem [shape: f32[4,39], index: 15, kind: input, shape index: {}]
  %s16 = inlined_call_operand.vmem [shape: f32[1,39], index: 16, kind: input, shape index: {}]
  %s17 = inlined_call_operand.vmem [shape: f32[39,2], index: 17, kind: input, shape index: {}]
  %s18 = inlined_call_operand.<no memory space> [shape: f32[1,1], index: 18, kind: input, shape index: {}]
  %s19 = inlined_call_operand.hbm [shape: f32[1,1,2], index: 19, kind: output, shape index: {}]
  %s20 = sld [smem:[#allocation0]]
  $region86: #{tpu_custom_call.1} parent=0
    _
  %s22 = ssub.s32 1, %s20
  %s23 = scalar_select 0, %s22, %s20
  %v24 = vstv %s18
  %25 = vst [vmem:[#allocation4] sm:$0x1] %v24
  $region1: #{tpu_custom_call.1} parent=0
    #allocation5 [shape = 'u8[512]{0}', space=vmem, size = 0x400, scoped, tag = 'output window, operand 0, single buffered']
    #allocation6 [shape = 's32[1]{0}', space=sflag, size = 0x4, scoped, tag = 'scoped memory for tpu_custom_call.1']
    %26 = vsyncpa [#allocation6], 0
    // Predicated region
    $region2: #{tpu_custom_call.1} parent=1 // pred_check
      _
    $region3: #{tpu_custom_call.1} parent=1 // pred_check_branch
      %28 = sbr.rel (0) target = $region5
    $region4: #{tpu_custom_call.1} parent=1 // pred_region
      _
    $region5: #{tpu_custom_call.1} parent=1 // pred_fallthru
      _
    // Predicated region
    $region6: #{tpu_custom_call.1} parent=1 // pred_check
      _
    $region7: #{tpu_custom_call.1} parent=1 // pred_check_branch
      %30 = sbr.rel (0) target = $region9
    $region8: #{tpu_custom_call.1} parent=1 // pred_region
      _
    $region9: #{tpu_custom_call.1} parent=1 // pred_fallthru
      _
    // Predicated region
    $region10: #{tpu_custom_call.1} parent=1 // pred_check
      _
    $region11: #{tpu_custom_call.1} parent=1 // pred_check_branch
      %32 = sbr.rel (0) target = $region13
    $region12: #{tpu_custom_call.1} parent=1 // pred_region
      _
    $region13: #{tpu_custom_call.1} parent=1 // pred_fallthru
      _
    // Predicated region
    $region14: #{tpu_custom_call.1} parent=1 // pred_check
      _
    $region15: #{tpu_custom_call.1} parent=1 // pred_check_branch
      %34 = sbr.rel (0) target = $region17
    $region16: #{tpu_custom_call.1} parent=1 // pred_region
      _
    $region17: #{tpu_custom_call.1} parent=1 // pred_fallthru
      _
    // Predicated region
    $region18: #{tpu_custom_call.1} parent=1 // pred_check
      _
    $region19: #{tpu_custom_call.1} parent=1 // pred_check_branch
      %36 = sbr.rel (0) target = $region21
    $region20: #{tpu_custom_call.1} parent=1 // pred_region
      _
    $region21: #{tpu_custom_call.1} parent=1 // pred_fallthru
      _
    // Predicated region
    $region22: #{tpu_custom_call.1} parent=1 // pred_check
      _
    $region23: #{tpu_custom_call.1} parent=1 // pred_check_branch
      %38 = sbr.rel (0) target = $region25
    $region24: #{tpu_custom_call.1} parent=1 // pred_region
      _
    $region25: #{tpu_custom_call.1} parent=1 // pred_fallthru
      _
    // Predicated region
    $region26: #{tpu_custom_call.1} parent=1 // pred_check
      _
    $region27: #{tpu_custom_call.1} parent=1 // pred_check_branch
      %40 = sbr.rel (0) target = $region29
    $region28: #{tpu_custom_call.1} parent=1 // pred_region
      _
    $region29: #{tpu_custom_call.1} parent=1 // pred_fallthru
      _
    // Predicated region
    $region30: #{tpu_custom_call.1} parent=1 // pred_check
      _
    $region31: #{tpu_custom_call.1} parent=1 // pred_check_branch
      %42 = sbr.rel (0) target = $region33
    $region32: #{tpu_custom_call.1} parent=1 // pred_region
      _
    $region33: #{tpu_custom_call.1} parent=1 // pred_fallthru
      _
    // Predicated region
    $region34: #{tpu_custom_call.1} parent=1 // pred_check
      _
    $region35: #{tpu_custom_call.1} parent=1 // pred_check_branch
      %44 = sbr.rel (0) target = $region37
    $region36: #{tpu_custom_call.1} parent=1 // pred_region
      _
    $region37: #{tpu_custom_call.1} parent=1 // pred_fallthru
      _
    // Predicated region
    $region38: #{tpu_custom_call.1} parent=1 // pred_check
      _
    $region39: #{tpu_custom_call.1} parent=1 // pred_check_branch
      %46 = sbr.rel (0) target = $region41
    $region40: #{tpu_custom_call.1} parent=1 // pred_region
      _
    $region41: #{tpu_custom_call.1} parent=1 // pred_fallthru
      _
    // Predicated region
    $region42: #{tpu_custom_call.1} parent=1 // pred_check
      _
    $region43: #{tpu_custom_call.1} parent=1 // pred_check_branch
      %48 = sbr.rel (0) target = $region45
    $region44: #{tpu_custom_call.1} parent=1 // pred_region
      _
    $region45: #{tpu_custom_call.1} parent=1 // pred_fallthru
      _
    // Predicated region
    $region46: #{tpu_custom_call.1} parent=1 // pred_check
      _
    $region47: #{tpu_custom_call.1} parent=1 // pred_check_branch
      %50 = sbr.rel (0) target = $region49
    $region48: #{tpu_custom_call.1} parent=1 // pred_region
      _
    $region49: #{tpu_custom_call.1} parent=1 // pred_fallthru
      _
    // Predicated region
    $region50: #{tpu_custom_call.1} parent=1 // pred_check
      _
    $region51: #{tpu_custom_call.1} parent=1 // pred_check_branch
      %52 = sbr.rel (0) target = $region53
    $region52: #{tpu_custom_call.1} parent=1 // pred_region
      _
    $region53: #{tpu_custom_call.1} parent=1 // pred_fallthru
      _
    // Predicated region
    $region54: #{tpu_custom_call.1} parent=1 // pred_check
      _
    $region55: #{tpu_custom_call.1} parent=1 // pred_check_branch
      %54 = sbr.rel (0) target = $region57
    $region56: #{tpu_custom_call.1} parent=1 // pred_region
      _
    $region57: #{tpu_custom_call.1} parent=1 // pred_fallthru
      _
    // Predicated region
    $region58: #{tpu_custom_call.1} parent=1 // pred_check
      _
    $region59: #{tpu_custom_call.1} parent=1 // pred_check_branch
      %56 = sbr.rel (0) target = $region61
    $region60: #{tpu_custom_call.1} parent=1 // pred_region
      _
    $region61: #{tpu_custom_call.1} parent=1 // pred_fallthru
      _
    // Predicated region
    $region62: #{tpu_custom_call.1} parent=1 // pred_check
      _
    $region63: #{tpu_custom_call.1} parent=1 // pred_check_branch
      %58 = sbr.rel (0) target = $region65
    $region64: #{tpu_custom_call.1} parent=1 // pred_region
      _
    $region65: #{tpu_custom_call.1} parent=1 // pred_fallthru
      _
    // Predicated region
    $region66: #{tpu_custom_call.1} parent=1 // pred_check
      _
    $region67: #{tpu_custom_call.1} parent=1 // pred_check_branch
      %60 = sbr.rel (0) target = $region69
    $region68: #{tpu_custom_call.1} parent=1 // pred_region
      _
    $region69: #{tpu_custom_call.1} parent=1 // pred_fallthru
      _
    // Predicated region
    $region70: #{tpu_custom_call.1} parent=1 // pred_check
      _
    $region71: #{tpu_custom_call.1} parent=1 // pred_check_branch
      %62 = sbr.rel (0) target = $region73
    $region72: #{tpu_custom_call.1} parent=1 // pred_region
      _
    $region73: #{tpu_custom_call.1} parent=1 // pred_fallthru
      _
    // Predicated region
    $region74: #{tpu_custom_call.1} parent=1 // pred_check
      _
    $region75: #{tpu_custom_call.1} parent=1 // pred_check_branch
      %64 = sbr.rel (0) target = $region77
    $region76: #{tpu_custom_call.1} parent=1 // pred_region
      _
    $region77: #{tpu_custom_call.1} parent=1 // pred_fallthru
      _
    %v65 = vld [vmem:[%s16] sm:$0x1]
    %v66 = vld [vmem:[%s0] sm:$0xf]
    %v67 = vld [vmem:[%s1] sm:$0xf]
    %v68 = vld [vmem:[%s2] sm:$0xff]
    %v69 = vld [vmem:[%s3] sm:$0xff]
    %v70 = vld [vmem:[%s4] sm:$0xff]
    %v71 = vld [vmem:[%s5] sm:$0xff]
    %v72 = vld [vmem:[%s6] sm:$0xff]
    %v73 = vld [vmem:[%s7] sm:$0xff]
    %s75 = vtos %v67
    %v76 = vstv %s75
    %v78 = vmul.f32 %v76, %v66
    %v79 = vadd.f32 %v78, 0.0
    %80 = vrot.lane.b32.xlu0 %v67, 127
    %v81 = vpop.permute.xlu0 %80
    %s82 = vtos %v81
    %v83 = vstv %s82
    %v85 = vmul.f32 %v83, %v66
    %87 = vrot.lane.b32.xlu0 %v85, 127
    %v88 = vpop.permute.xlu0 %87
    %v90 = vadd.f32 %v79, %v88
    %91 = vrot.lane.b32.xlu0 %v67, 126
    %v92 = vpop.permute.xlu0 %91
    %s93 = vtos %v92
    %v94 = vstv %s93
    %v96 = vmul.f32 %v94, %v66
    %98 = vrot.lane.b32.xlu0 %v96, 126
    %v99 = vpop.permute.xlu0 %98
    %v101 = vadd.f32 %v90, %v99
    %102 = vrot.lane.b32.xlu0 %v67, 125
    %v103 = vpop.permute.xlu0 %102
    %s104 = vtos %v103
    %v105 = vstv %s104
    %v107 = vmul.f32 %v105, %v66
    %109 = vrot.lane.b32.xlu0 %v107, 125
    %v110 = vpop.permute.xlu0 %109
    %v112 = vadd.f32 %v101, %v110
    %v113 = vrot.slane %v67, 1
    %s114 = vtos %v113
    %v115 = vstv %s114
    %v117 = vmul.f32 %v115, %v66
    %v118 = vadd.f32 %v117, 0.0
    %119 = vrot.lane.b32.xlu0 %v113, 127
    %v120 = vpop.permute.xlu0 %119
    %s121 = vtos %v120
    %v122 = vstv %s121
    %v124 = vmul.f32 %v122, %v66
    %126 = vrot.lane.b32.xlu0 %v124, 127
    %v127 = vpop.permute.xlu0 %126
    %v129 = vadd.f32 %v118, %v127
    %130 = vrot.lane.b32.xlu0 %v113, 126
    %v131 = vpop.permute.xlu0 %130
    %s132 = vtos %v131
    %v133 = vstv %s132
    %v135 = vmul.f32 %v133, %v66
    %137 = vrot.lane.b32.xlu0 %v135, 126
    %v138 = vpop.permute.xlu0 %137
    %v140 = vadd.f32 %v129, %v138
    %141 = vrot.lane.b32.xlu0 %v113, 125
    %v142 = vpop.permute.xlu0 %141
    %s143 = vtos %v142
    %v144 = vstv %s143
    %v146 = vmul.f32 %v144, %v66
    %148 = vrot.lane.b32.xlu0 %v146, 125
    %v149 = vpop.permute.xlu0 %148
    %v151 = vadd.f32 %v140, %v149
    %153 = vrot.lane.b32.xlu0 %v68, 124
    %v154 = vpop.permute.xlu0 %153
    %vm155 = vcmask 31744
    %v156 = vsel %vm155, %v154, 0
    %vm158 = vcmask 1043456
    %v160 = vsel %vm158, %v151, 0
    %162 = vmatprep.subr.mxu0 0.0
    %163 = vmatpush1.msra.mxu0 0.0
    %164 = vmatprep.subr.mxu0 0.0
    %165 = vmatpush1.msra.mxu0 0.0
    %166 = vmatprep.subr.mxu0 0.0
    %167 = vmatpush1.msra.mxu0 0.0
    %168 = vmatprep.subr.mxu0 0.0
    %169 = vmatpush1.msra.mxu0 0.0
    %170 = vmatprep.subr.mxu0 0.0
    %171 = vmatpush1.msra.mxu0 0.0
    %172 = vmatprep.subr.mxu0 0.0
    %173 = vmatpush1.msra.mxu0 0.0
    %174 = vmatprep.subr.mxu0 0.0
    %175 = vmatpush1.msra.mxu0 0.0
    %176 = vmatprep.subr.mxu0 0.0
    %177 = vmatpush1.msra.mxu0 0.0
    %178 = vmatprep.subr.mxu0 0.0
    %179 = vmatpush1.msra.mxu0 0.0
    %180 = vmatprep.subr.mxu0 0.0
    %181 = vmatpush1.msra.mxu0 0.0
    %182 = vmatprep.subr.mxu0 0.0
    %183 = vmatpush1.msra.mxu0 0.0
    %184 = vmatprep.subr.mxu0 0.0
    %185 = vmatpush1.msra.mxu0 0.0
    %186 = vmatprep.subr.mxu0 0.0
    %187 = vmatpush1.msra.mxu0 0.0
    %188 = vmatprep.subr.mxu0 0.0
    %189 = vmatpush1.msra.mxu0 0.0
    %190 = vmatprep.subr.mxu0 0.0
    %191 = vmatpush1.msra.mxu0 0.0
    %192 = vmatprep.subr.mxu0 0.0
    %193 = vmatpush1.msra.mxu0 %v160
    %194 = vmatprep.subr.mxu0 0.0
    %195 = vmatpush2.msra.mxu0 0.0
    %196 = vmatprep.subr.mxu0 0.0
    %197 = vmatpush2.msra.mxu0 0.0
    %198 = vmatprep.subr.mxu0 0.0
    %199 = vmatpush2.msra.mxu0 0.0
    %200 = vmatprep.subr.mxu0 0.0
    %201 = vmatpush2.msra.mxu0 0.0
    %202 = vmatprep.subr.mxu0 0.0
    %203 = vmatpush2.msra.mxu0 0.0
    %204 = vmatprep.subr.mxu0 0.0
    %205 = vmatpush2.msra.mxu0 0.0
    %206 = vmatprep.subr.mxu0 0.0
    %207 = vmatpush2.msra.mxu0 0.0
    %208 = vmatprep.subr.mxu0 0.0
    %209 = vmatpush2.msra.mxu0 0.0
    %210 = vmatprep.subr.mxu0 0.0
    %211 = vmatpush2.msra.mxu0 0.0
    %212 = vmatprep.subr.mxu0 0.0
    %213 = vmatpush2.msra.mxu0 0.0
    %214 = vmatprep.subr.mxu0 0.0
    %215 = vmatpush2.msra.mxu0 0.0
    %216 = vmatprep.subr.mxu0 0.0
    %217 = vmatpush2.msra.mxu0 0.0
    %218 = vmatprep.subr.mxu0 0.0
    %219 = vmatpush2.msra.mxu0 0.0
    %220 = vmatprep.subr.mxu0 0.0
    %221 = vmatpush2.msra.mxu0 0.0
    %222 = vmatprep.subr.mxu0 0.0
    %223 = vmatpush2.msra.mxu0 0.0
    %224 = vmatprep.subr.mxu0 0.0
    %225 = vmatpush2.msra.mxu0 0.0
    %226 = vmatprep.mubr.f32.mxu0 0.0
    %227 = vmatmul.mubr.f32.gmra.mxu0 %v156
    %v228 = vpop.f32.mrf.mxu0
    %v229 = vadd.f32 0.0, %v228
    %v230 = vpop.f32.mrf.mxu0
    %231 = vdwg.mxu0
    %v232 = vsel %vm155, %v68, 0
    %v235 = vsel %vm158, %v112, 0
    %237 = vmatprep.subr.mxu0 0.0
    %238 = vmatpush1.msra.mxu0 0.0
    %239 = vmatprep.subr.mxu0 0.0
    %240 = vmatpush1.msra.mxu0 0.0
    %241 = vmatprep.subr.mxu0 0.0
    %242 = vmatpush1.msra.mxu0 0.0
    %243 = vmatprep.subr.mxu0 0.0
    %244 = vmatpush1.msra.mxu0 0.0
    %245 = vmatprep.subr.mxu0 0.0
    %246 = vmatpush1.msra.mxu0 0.0
    %247 = vmatprep.subr.mxu0 0.0
    %248 = vmatpush1.msra.mxu0 0.0
    %249 = vmatprep.subr.mxu0 0.0
    %250 = vmatpush1.msra.mxu0 0.0
    %251 = vmatprep.subr.mxu0 0.0
    %252 = vmatpush1.msra.mxu0 0.0
    %253 = vmatprep.subr.mxu0 0.0
    %254 = vmatpush1.msra.mxu0 0.0
    %255 = vmatprep.subr.mxu0 0.0
    %256 = vmatpush1.msra.mxu0 0.0
    %257 = vmatprep.subr.mxu0 0.0
    %258 = vmatpush1.msra.mxu0 0.0
    %259 = vmatprep.subr.mxu0 0.0
    %260 = vmatpush1.msra.mxu0 0.0
    %261 = vmatprep.subr.mxu0 0.0
    %262 = vmatpush1.msra.mxu0 0.0
    %263 = vmatprep.subr.mxu0 0.0
    %264 = vmatpush1.msra.mxu0 0.0
    %265 = vmatprep.subr.mxu0 0.0
    %266 = vmatpush1.msra.mxu0 0.0
    %267 = vmatprep.subr.mxu0 0.0
    %268 = vmatpush1.msra.mxu0 %v235
    %269 = vmatprep.subr.mxu0 0.0
    %270 = vmatpush2.msra.mxu0 0.0
    %271 = vmatprep.subr.mxu0 0.0
    %272 = vmatpush2.msra.mxu0 0.0
    %273 = vmatprep.subr.mxu0 0.0
    %274 = vmatpush2.msra.mxu0 0.0
    %275 = vmatprep.subr.mxu0 0.0
    %276 = vmatpush2.msra.mxu0 0.0
    %277 = vmatprep.subr.mxu0 0.0
    %278 = vmatpush2.msra.mxu0 0.0
    %279 = vmatprep.subr.mxu0 0.0
    %280 = vmatpush2.msra.mxu0 0.0
    %281 = vmatprep.subr.mxu0 0.0
    %282 = vmatpush2.msra.mxu0 0.0
    %283 = vmatprep.subr.mxu0 0.0
    %284 = vmatpush2.msra.mxu0 0.0
    %285 = vmatprep.subr.mxu0 0.0
    %286 = vmatpush2.msra.mxu0 0.0
    %287 = vmatprep.subr.mxu0 0.0
    %288 = vmatpush2.msra.mxu0 0.0
    %289 = vmatprep.subr.mxu0 0.0
    %290 = vmatpush2.msra.mxu0 0.0
    %291 = vmatprep.subr.mxu0 0.0
    %292 = vmatpush2.msra.mxu0 0.0
    %293 = vmatprep.subr.mxu0 0.0
    %294 = vmatpush2.msra.mxu0 0.0
    %295 = vmatprep.subr.mxu0 0.0
    %296 = vmatpush2.msra.mxu0 0.0
    %297 = vmatprep.subr.mxu0 0.0
    %298 = vmatpush2.msra.mxu0 0.0
    %299 = vmatprep.subr.mxu0 0.0
    %300 = vmatpush2.msra.mxu0 0.0
    %301 = vmatprep.mubr.f32.mxu0 0.0
    %302 = vmatmul.mubr.f32.gmra.mxu0 %v232
    %v303 = vpop.f32.mrf.mxu0
    %v304 = vadd.f32 %v229, %v303
    %v305 = vpop.f32.mrf.mxu0
    %306 = vdwg.mxu0
    %v307 = vrot.slane %v67, 2
    %s308 = vtos %v307
    %v309 = vstv %s308
    %v311 = vmul.f32 %v309, %v66
    %v312 = vadd.f32 %v311, 0.0
    %313 = vrot.lane.b32.xlu0 %v307, 127
    %v314 = vpop.permute.xlu0 %313
    %s315 = vtos %v314
    %v316 = vstv %s315
    %v318 = vmul.f32 %v316, %v66
    %320 = vrot.lane.b32.xlu0 %v318, 127
    %v321 = vpop.permute.xlu0 %320
    %v323 = vadd.f32 %v312, %v321
    %324 = vrot.lane.b32.xlu0 %v307, 126
    %v325 = vpop.permute.xlu0 %324
    %s326 = vtos %v325
    %v327 = vstv %s326
    %v329 = vmul.f32 %v327, %v66
    %331 = vrot.lane.b32.xlu0 %v329, 126
    %v332 = vpop.permute.xlu0 %331
    %v334 = vadd.f32 %v323, %v332
    %335 = vrot.lane.b32.xlu0 %v307, 125
    %v336 = vpop.permute.xlu0 %335
    %s337 = vtos %v336
    %v338 = vstv %s337
    %v340 = vmul.f32 %v338, %v66
    %342 = vrot.lane.b32.xlu0 %v340, 125
    %v343 = vpop.permute.xlu0 %342
    %v345 = vadd.f32 %v334, %v343
    %346 = vrot.lane.b32.xlu0 %v68, 120
    %v347 = vpop.permute.xlu0 %346
    %v348 = vsel %vm155, %v347, 0
    %v351 = vsel %vm158, %v345, 0
    %353 = vmatprep.subr.mxu0 0.0
    %354 = vmatpush1.msra.mxu0 0.0
    %355 = vmatprep.subr.mxu0 0.0
    %356 = vmatpush1.msra.mxu0 0.0
    %357 = vmatprep.subr.mxu0 0.0
    %358 = vmatpush1.msra.mxu0 0.0
    %359 = vmatprep.subr.mxu0 0.0
    %360 = vmatpush1.msra.mxu0 0.0
    %361 = vmatprep.subr.mxu0 0.0
    %362 = vmatpush1.msra.mxu0 0.0
    %363 = vmatprep.subr.mxu0 0.0
    %364 = vmatpush1.msra.mxu0 0.0
    %365 = vmatprep.subr.mxu0 0.0
    %366 = vmatpush1.msra.mxu0 0.0
    %367 = vmatprep.subr.mxu0 0.0
    %368 = vmatpush1.msra.mxu0 0.0
    %369 = vmatprep.subr.mxu0 0.0
    %370 = vmatpush1.msra.mxu0 0.0
    %371 = vmatprep.subr.mxu0 0.0
    %372 = vmatpush1.msra.mxu0 0.0
    %373 = vmatprep.subr.mxu0 0.0
    %374 = vmatpush1.msra.mxu0 0.0
    %375 = vmatprep.subr.mxu0 0.0
    %376 = vmatpush1.msra.mxu0 0.0
    %377 = vmatprep.subr.mxu0 0.0
    %378 = vmatpush1.msra.mxu0 0.0
    %379 = vmatprep.subr.mxu0 0.0
    %380 = vmatpush1.msra.mxu0 0.0
    %381 = vmatprep.subr.mxu0 0.0
    %382 = vmatpush1.msra.mxu0 0.0
    %383 = vmatprep.subr.mxu0 0.0
    %384 = vmatpush1.msra.mxu0 %v351
    %385 = vmatprep.subr.mxu0 0.0
    %386 = vmatpush2.msra.mxu0 0.0
    %387 = vmatprep.subr.mxu0 0.0
    %388 = vmatpush2.msra.mxu0 0.0
    %389 = vmatprep.subr.mxu0 0.0
    %390 = vmatpush2.msra.mxu0 0.0
    %391 = vmatprep.subr.mxu0 0.0
    %392 = vmatpush2.msra.mxu0 0.0
    %393 = vmatprep.subr.mxu0 0.0
    %394 = vmatpush2.msra.mxu0 0.0
    %395 = vmatprep.subr.mxu0 0.0
    %396 = vmatpush2.msra.mxu0 0.0
    %397 = vmatprep.subr.mxu0 0.0
    %398 = vmatpush2.msra.mxu0 0.0
    %399 = vmatprep.subr.mxu0 0.0
    %400 = vmatpush2.msra.mxu0 0.0
    %401 = vmatprep.subr.mxu0 0.0
    %402 = vmatpush2.msra.mxu0 0.0
    %403 = vmatprep.subr.mxu0 0.0
    %404 = vmatpush2.msra.mxu0 0.0
    %405 = vmatprep.subr.mxu0 0.0
    %406 = vmatpush2.msra.mxu0 0.0
    %407 = vmatprep.subr.mxu0 0.0
    %408 = vmatpush2.msra.mxu0 0.0
    %409 = vmatprep.subr.mxu0 0.0
    %410 = vmatpush2.msra.mxu0 0.0
    %411 = vmatprep.subr.mxu0 0.0
    %412 = vmatpush2.msra.mxu0 0.0
    %413 = vmatprep.subr.mxu0 0.0
    %414 = vmatpush2.msra.mxu0 0.0
    %415 = vmatprep.subr.mxu0 0.0
    %416 = vmatpush2.msra.mxu0 0.0
    %417 = vmatprep.mubr.f32.mxu0 0.0
    %418 = vmatmul.mubr.f32.gmra.mxu0 %v348
    %v419 = vpop.f32.mrf.mxu0
    %v420 = vadd.f32 0.0, %v419
    %v421 = vpop.f32.mrf.mxu0
    %422 = vdwg.mxu0
    %v423 = vadd.f32 %v304, %v420
    %v424 = vrot.slane %v67, 3
    %s425 = vtos %v424
    %v426 = vstv %s425
    %v428 = vmul.f32 %v426, %v66
    %v429 = vadd.f32 %v428, 0.0
    %430 = vrot.lane.b32.xlu0 %v424, 127
    %v431 = vpop.permute.xlu0 %430
    %s432 = vtos %v431
    %v433 = vstv %s432
    %v435 = vmul.f32 %v433, %v66
    %437 = vrot.lane.b32.xlu0 %v435, 127
    %v438 = vpop.permute.xlu0 %437
    %v440 = vadd.f32 %v429, %v438
    %441 = vrot.lane.b32.xlu0 %v424, 126
    %v442 = vpop.permute.xlu0 %441
    %s443 = vtos %v442
    %v444 = vstv %s443
    %v446 = vmul.f32 %v444, %v66
    %448 = vrot.lane.b32.xlu0 %v446, 126
    %v449 = vpop.permute.xlu0 %448
    %v451 = vadd.f32 %v440, %v449
    %452 = vrot.lane.b32.xlu0 %v424, 125
    %v453 = vpop.permute.xlu0 %452
    %s454 = vtos %v453
    %v455 = vstv %s454
    %v457 = vmul.f32 %v455, %v66
    %459 = vrot.lane.b32.xlu0 %v457, 125
    %v460 = vpop.permute.xlu0 %459
    %v462 = vadd.f32 %v451, %v460
    %463 = vrot.lane.b32.xlu0 %v68, 116
    %v464 = vpop.permute.xlu0 %463
    %v465 = vsel %vm155, %v464, 0
    %v468 = vsel %vm158, %v462, 0
    %470 = vmatprep.subr.mxu0 0.0
    %471 = vmatpush1.msra.mxu0 0.0
    %472 = vmatprep.subr.mxu0 0.0
    %473 = vmatpush1.msra.mxu0 0.0
    %474 = vmatprep.subr.mxu0 0.0
    %475 = vmatpush1.msra.mxu0 0.0
    %476 = vmatprep.subr.mxu0 0.0
    %477 = vmatpush1.msra.mxu0 0.0
    %478 = vmatprep.subr.mxu0 0.0
    %479 = vmatpush1.msra.mxu0 0.0
    %480 = vmatprep.subr.mxu0 0.0
    %481 = vmatpush1.msra.mxu0 0.0
    %482 = vmatprep.subr.mxu0 0.0
    %483 = vmatpush1.msra.mxu0 0.0
    %484 = vmatprep.subr.mxu0 0.0
    %485 = vmatpush1.msra.mxu0 0.0
    %486 = vmatprep.subr.mxu0 0.0
    %487 = vmatpush1.msra.mxu0 0.0
    %488 = vmatprep.subr.mxu0 0.0
    %489 = vmatpush1.msra.mxu0 0.0
    %490 = vmatprep.subr.mxu0 0.0
    %491 = vmatpush1.msra.mxu0 0.0
    %492 = vmatprep.subr.mxu0 0.0
    %493 = vmatpush1.msra.mxu0 0.0
    %494 = vmatprep.subr.mxu0 0.0
    %495 = vmatpush1.msra.mxu0 0.0
    %496 = vmatprep.subr.mxu0 0.0
    %497 = vmatpush1.msra.mxu0 0.0
    %498 = vmatprep.subr.mxu0 0.0
    %499 = vmatpush1.msra.mxu0 0.0
    %500 = vmatprep.subr.mxu0 0.0
    %501 = vmatpush1.msra.mxu0 %v468
    %502 = vmatprep.subr.mxu0 0.0
    %503 = vmatpush2.msra.mxu0 0.0
    %504 = vmatprep.subr.mxu0 0.0
    %505 = vmatpush2.msra.mxu0 0.0
    %506 = vmatprep.subr.mxu0 0.0
    %507 = vmatpush2.msra.mxu0 0.0
    %508 = vmatprep.subr.mxu0 0.0
    %509 = vmatpush2.msra.mxu0 0.0
    %510 = vmatprep.subr.mxu0 0.0
    %511 = vmatpush2.msra.mxu0 0.0
    %512 = vmatprep.subr.mxu0 0.0
    %513 = vmatpush2.msra.mxu0 0.0
    %514 = vmatprep.subr.mxu0 0.0
    %515 = vmatpush2.msra.mxu0 0.0
    %516 = vmatprep.subr.mxu0 0.0
    %517 = vmatpush2.msra.mxu0 0.0
    %518 = vmatprep.subr.mxu0 0.0
    %519 = vmatpush2.msra.mxu0 0.0
    %520 = vmatprep.subr.mxu0 0.0
    %521 = vmatpush2.msra.mxu0 0.0
    %522 = vmatprep.subr.mxu0 0.0
    %523 = vmatpush2.msra.mxu0 0.0
    %524 = vmatprep.subr.mxu0 0.0
    %525 = vmatpush2.msra.mxu0 0.0
    %526 = vmatprep.subr.mxu0 0.0
    %527 = vmatpush2.msra.mxu0 0.0
    %528 = vmatprep.subr.mxu0 0.0
    %529 = vmatpush2.msra.mxu0 0.0
    %530 = vmatprep.subr.mxu0 0.0
    %531 = vmatpush2.msra.mxu0 0.0
    %532 = vmatprep.subr.mxu0 0.0
    %533 = vmatpush2.msra.mxu0 0.0
    %534 = vmatprep.mubr.f32.mxu0 0.0
    %535 = vmatmul.mubr.f32.gmra.mxu0 %v465
    %v536 = vpop.f32.mrf.mxu0
    %v537 = vadd.f32 0.0, %v536
    %v538 = vpop.f32.mrf.mxu0
    %539 = vdwg.mxu0
    %v540 = vadd.f32 %v423, %v537
    %542 = vset.pattern.permute.xlu0 0
    %543 = vperm.xlu0 %542, %v69
    %v544 = vpop.permute.xlu0 %543
    %v546 = vadd.f32 %v540, %v544
    %vm547 = vcmp.gt.f32.partialorder %v546, 0.0
    %v548 = vmin.f32 %v546, 0.0
    %v549 = vmul.f32 %v548, 1.442695
    %v550 = vpow.pop %v549
    %v551 = vsub.f32 %v550, 1.0
    %v552 = vsel %vm547, %v546, %v551
    %v554 = vlaneseq
    %v555 = vshrl.u32 %v554, 7
    %v556 = vsub.s32 0, %v555
    %v557 = vrot.slane %v65, %v556
    %v559 = vmul.f32 %v552, %v557
    %vm560 = vcmask 343040
    %561 = vst.msk [vmem:[#allocation2] sm:$0xff] %vm560, 0.0
    %563 = vrot.lane.b32.xlu0 %v559, 2
    %v564 = vpop.permute.xlu0 %563
    %vm566 = vcmask 334864
    %567 = vst.msk [vmem:[#allocation2] sm:$0xff] %vm566, %v564
    %v568 = vld [vmem:[#allocation2] sm:$0xff]
    %570 = vset.pattern.permute.xlu0 0
    %571 = vperm.xlu0 %570, %v70
    %v572 = vpop.permute.xlu0 %571
    %v574 = vmul.f32 %v572, %v568
    %v575 = vadd.f32 %v574, 0.0
    %576 = vset.pattern.permute.xlu0 1
    %577 = vperm.xlu0 %576, %v70
    %v578 = vpop.permute.xlu0 %577
    %v580 = vmul.f32 %v578, %v568
    %582 = vrot.lane.b32.xlu0 %v580, 127
    %v583 = vpop.permute.xlu0 %582
    %v585 = vadd.f32 %v575, %v583
    %586 = vset.pattern.permute.xlu0 2
    %587 = vperm.xlu0 %586, %v70
    %v588 = vpop.permute.xlu0 %587
    %v590 = vmul.f32 %v588, %v568
    %592 = vrot.lane.b32.xlu0 %v590, 126
    %v593 = vpop.permute.xlu0 %592
    %v595 = vadd.f32 %v585, %v593
    %596 = vset.pattern.permute.xlu0 3
    %597 = vperm.xlu0 %596, %v70
    %v598 = vpop.permute.xlu0 %597
    %v600 = vmul.f32 %v598, %v568
    %602 = vrot.lane.b32.xlu0 %v600, 125
    %v603 = vpop.permute.xlu0 %602
    %v605 = vadd.f32 %v595, %v603
    %607 = vset.pattern.permute.xlu0 0
    %608 = vperm.xlu0 %607, %v72
    %v609 = vpop.permute.xlu0 %608
    %vm611 = vcmask 64512
    %v613 = vsel %vm611, %v71, 0
    %615 = vmatprep.subr.mxu0 0.0
    %616 = vmatpush1.msra.mxu0 0.0
    %617 = vmatprep.subr.mxu0 0.0
    %618 = vmatpush1.msra.mxu0 0.0
    %619 = vmatprep.subr.mxu0 0.0
    %620 = vmatpush1.msra.mxu0 0.0
    %621 = vmatprep.subr.mxu0 0.0
    %622 = vmatpush1.msra.mxu0 0.0
    %623 = vmatprep.subr.mxu0 0.0
    %624 = vmatpush1.msra.mxu0 0.0
    %625 = vmatprep.subr.mxu0 0.0
    %626 = vmatpush1.msra.mxu0 0.0
    %627 = vmatprep.subr.mxu0 0.0
    %628 = vmatpush1.msra.mxu0 0.0
    %629 = vmatprep.subr.mxu0 0.0
    %630 = vmatpush1.msra.mxu0 0.0
    %631 = vmatprep.subr.mxu0 0.0
    %632 = vmatpush1.msra.mxu0 0.0
    %633 = vmatprep.subr.mxu0 0.0
    %634 = vmatpush1.msra.mxu0 0.0
    %635 = vmatprep.subr.mxu0 0.0
    %636 = vmatpush1.msra.mxu0 0.0
    %637 = vmatprep.subr.mxu0 0.0
    %638 = vmatpush1.msra.mxu0 0.0
    %639 = vmatprep.subr.mxu0 0.0
    %640 = vmatpush1.msra.mxu0 0.0
    %641 = vmatprep.subr.mxu0 0.0
    %642 = vmatpush1.msra.mxu0 0.0
    %643 = vmatprep.subr.mxu0 0.0
    %644 = vmatpush1.msra.mxu0 0.0
    %645 = vmatprep.subr.mxu0 0.0
    %646 = vmatpush1.msra.mxu0 %v605
    %647 = vmatprep.subr.mxu0 0.0
    %648 = vmatpush2.msra.mxu0 0.0
    %649 = vmatprep.subr.mxu0 0.0
    %650 = vmatpush2.msra.mxu0 0.0
    %651 = vmatprep.subr.mxu0 0.0
    %652 = vmatpush2.msra.mxu0 0.0
    %653 = vmatprep.subr.mxu0 0.0
    %654 = vmatpush2.msra.mxu0 0.0
    %655 = vmatprep.subr.mxu0 0.0
    %656 = vmatpush2.msra.mxu0 0.0
    %657 = vmatprep.subr.mxu0 0.0
    %658 = vmatpush2.msra.mxu0 0.0
    %659 = vmatprep.subr.mxu0 0.0
    %660 = vmatpush2.msra.mxu0 0.0
    %661 = vmatprep.subr.mxu0 0.0
    %662 = vmatpush2.msra.mxu0 0.0
    %663 = vmatprep.subr.mxu0 0.0
    %664 = vmatpush2.msra.mxu0 0.0
    %665 = vmatprep.subr.mxu0 0.0
    %666 = vmatpush2.msra.mxu0 0.0
    %667 = vmatprep.subr.mxu0 0.0
    %668 = vmatpush2.msra.mxu0 0.0
    %669 = vmatprep.subr.mxu0 0.0
    %670 = vmatpush2.msra.mxu0 0.0
    %671 = vmatprep.subr.mxu0 0.0
    %672 = vmatpush2.msra.mxu0 0.0
    %673 = vmatprep.subr.mxu0 0.0
    %674 = vmatpush2.msra.mxu0 0.0
    %675 = vmatprep.subr.mxu0 0.0
    %676 = vmatpush2.msra.mxu0 0.0
    %677 = vmatprep.subr.mxu0 0.0
    %678 = vmatpush2.msra.mxu0 0.0
    %679 = vmatprep.mubr.f32.mxu0 0.0
    %680 = vmatmul.mubr.f32.gmra.mxu0 %v613
    %v681 = vpop.f32.mrf.mxu0
    %v682 = vadd.f32 %v609, %v681
    %v683 = vpop.f32.mrf.mxu0
    %684 = vdwg.mxu0
    %vm685 = vcmp.gt.f32.partialorder %v682, 0.0
    %v686 = vmin.f32 %v682, 0.0
    %v687 = vmul.f32 %v686, 1.442695
    %v688 = vpow.pop %v687
    %v689 = vsub.f32 %v688, 1.0
    %v690 = vsel %vm685, %v682, %v689
    %v691 = vmul.f32 %v690, %v73
    %vm692 = vcmask 318464
    %v693 = vsel %vm692, %v691, 0.0
    %v694 = vrot.slane %v693, 4
    %v695 = vadd.f32 %v693, %v694
    %v696 = vrot.slane %v695, 2
    %v697 = vadd.f32 %v695, %v696
    %v698 = vrot.slane %v697, 1
    %v699 = vadd.f32 %v697, %v698
    %v700 = vld [vmem:[%s8] sm:$0x3f]
    %v701 = vld [vmem:[%s9] sm:$0x3]
    %v702 = vld [vmem:[%s10] sm:$0xf]
    %v703 = vld [vmem:[%s11] sm:$0xf]
    %v704 = vld [vmem:[%s12] sm:$0xf]
    %v705 = vld [vmem:[%s13] sm:$0xf]
    %v706 = vld [vmem:[%s14] sm:$0xf]
    %v707 = vld [vmem:[%s15] sm:$0xf]
    %s709 = vtos %v701
    %v710 = vstv %s709
    %v712 = vmul.f32 %v710, %v700
    %v713 = vadd.f32 %v712, 0.0
    %714 = vrot.lane.b32.xlu0 %v701, 127
    %v715 = vpop.permute.xlu0 %714
    %s716 = vtos %v715
    %v717 = vstv %s716
    %v719 = vmul.f32 %v717, %v700
    %721 = vrot.lane.b32.xlu0 %v719, 127
    %v722 = vpop.permute.xlu0 %721
    %v724 = vadd.f32 %v713, %v722
    %725 = vrot.lane.b32.xlu0 %v701, 126
    %v726 = vpop.permute.xlu0 %725
    %s727 = vtos %v726
    %v728 = vstv %s727
    %v730 = vmul.f32 %v728, %v700
    %732 = vrot.lane.b32.xlu0 %v730, 126
    %v733 = vpop.permute.xlu0 %732
    %v735 = vadd.f32 %v724, %v733
    %736 = vrot.lane.b32.xlu0 %v701, 125
    %v737 = vpop.permute.xlu0 %736
    %s738 = vtos %v737
    %v739 = vstv %s738
    %v741 = vmul.f32 %v739, %v700
    %743 = vrot.lane.b32.xlu0 %v741, 125
    %v744 = vpop.permute.xlu0 %743
    %v746 = vadd.f32 %v735, %v744
    %v747 = vrot.slane %v701, 1
    %s748 = vtos %v747
    %v749 = vstv %s748
    %v751 = vmul.f32 %v749, %v700
    %v752 = vadd.f32 %v751, 0.0
    %753 = vrot.lane.b32.xlu0 %v747, 127
    %v754 = vpop.permute.xlu0 %753
    %s755 = vtos %v754
    %v756 = vstv %s755
    %v758 = vmul.f32 %v756, %v700
    %760 = vrot.lane.b32.xlu0 %v758, 127
    %v761 = vpop.permute.xlu0 %760
    %v763 = vadd.f32 %v752, %v761
    %764 = vrot.lane.b32.xlu0 %v747, 126
    %v765 = vpop.permute.xlu0 %764
    %s766 = vtos %v765
    %v767 = vstv %s766
    %v769 = vmul.f32 %v767, %v700
    %771 = vrot.lane.b32.xlu0 %v769, 126
    %v772 = vpop.permute.xlu0 %771
    %v774 = vadd.f32 %v763, %v772
    %775 = vrot.lane.b32.xlu0 %v747, 125
    %v776 = vpop.permute.xlu0 %775
    %s777 = vtos %v776
    %v778 = vstv %s777
    %v780 = vmul.f32 %v778, %v700
    %782 = vrot.lane.b32.xlu0 %v780, 125
    %v783 = vpop.permute.xlu0 %782
    %v785 = vadd.f32 %v774, %v783
    %787 = vrot.lane.b32.xlu0 %v702, 122
    %v788 = vpop.permute.xlu0 %787
    %vm789 = vcmask 48128
    %v790 = vsel %vm789, %v788, 0
    %vm792 = vcmask 1045504
    %v794 = vsel %vm792, %v785, 0
    %796 = vmatprep.subr.mxu0 0.0
    %797 = vmatpush1.msra.mxu0 0.0
    %798 = vmatprep.subr.mxu0 0.0
    %799 = vmatpush1.msra.mxu0 0.0
    %800 = vmatprep.subr.mxu0 0.0
    %801 = vmatpush1.msra.mxu0 0.0
    %802 = vmatprep.subr.mxu0 0.0
    %803 = vmatpush1.msra.mxu0 0.0
    %804 = vmatprep.subr.mxu0 0.0
    %805 = vmatpush1.msra.mxu0 0.0
    %806 = vmatprep.subr.mxu0 0.0
    %807 = vmatpush1.msra.mxu0 0.0
    %808 = vmatprep.subr.mxu0 0.0
    %809 = vmatpush1.msra.mxu0 0.0
    %810 = vmatprep.subr.mxu0 0.0
    %811 = vmatpush1.msra.mxu0 0.0
    %812 = vmatprep.subr.mxu0 0.0
    %813 = vmatpush1.msra.mxu0 0.0
    %814 = vmatprep.subr.mxu0 0.0
    %815 = vmatpush1.msra.mxu0 0.0
    %816 = vmatprep.subr.mxu0 0.0
    %817 = vmatpush1.msra.mxu0 0.0
    %818 = vmatprep.subr.mxu0 0.0
    %819 = vmatpush1.msra.mxu0 0.0
    %820 = vmatprep.subr.mxu0 0.0
    %821 = vmatpush1.msra.mxu0 0.0
    %822 = vmatprep.subr.mxu0 0.0
    %823 = vmatpush1.msra.mxu0 0.0
    %824 = vmatprep.subr.mxu0 0.0
    %825 = vmatpush1.msra.mxu0 0.0
    %826 = vmatprep.subr.mxu0 0.0
    %827 = vmatpush1.msra.mxu0 %v794
    %828 = vmatprep.subr.mxu0 0.0
    %829 = vmatpush2.msra.mxu0 0.0
    %830 = vmatprep.subr.mxu0 0.0
    %831 = vmatpush2.msra.mxu0 0.0
    %832 = vmatprep.subr.mxu0 0.0
    %833 = vmatpush2.msra.mxu0 0.0
    %834 = vmatprep.subr.mxu0 0.0
    %835 = vmatpush2.msra.mxu0 0.0
    %836 = vmatprep.subr.mxu0 0.0
    %837 = vmatpush2.msra.mxu0 0.0
    %838 = vmatprep.subr.mxu0 0.0
    %839 = vmatpush2.msra.mxu0 0.0
    %840 = vmatprep.subr.mxu0 0.0
    %841 = vmatpush2.msra.mxu0 0.0
    %842 = vmatprep.subr.mxu0 0.0
    %843 = vmatpush2.msra.mxu0 0.0
    %844 = vmatprep.subr.mxu0 0.0
    %845 = vmatpush2.msra.mxu0 0.0
    %846 = vmatprep.subr.mxu0 0.0
    %847 = vmatpush2.msra.mxu0 0.0
    %848 = vmatprep.subr.mxu0 0.0
    %849 = vmatpush2.msra.mxu0 0.0
    %850 = vmatprep.subr.mxu0 0.0
    %851 = vmatpush2.msra.mxu0 0.0
    %852 = vmatprep.subr.mxu0 0.0
    %853 = vmatpush2.msra.mxu0 0.0
    %854 = vmatprep.subr.mxu0 0.0
    %855 = vmatpush2.msra.mxu0 0.0
    %856 = vmatprep.subr.mxu0 0.0
    %857 = vmatpush2.msra.mxu0 0.0
    %858 = vmatprep.subr.mxu0 0.0
    %859 = vmatpush2.msra.mxu0 0.0
    %860 = vmatprep.mubr.f32.mxu0 0.0
    %861 = vmatmul.mubr.f32.gmra.mxu0 %v790
    %v862 = vpop.f32.mrf.mxu0
    %v863 = vadd.f32 0.0, %v862
    %v864 = vpop.f32.mrf.mxu0
    %865 = vdwg.mxu0
    %v866 = vsel %vm789, %v702, 0
    %v869 = vsel %vm792, %v746, 0
    %871 = vmatprep.subr.mxu0 0.0
    %872 = vmatpush1.msra.mxu0 0.0
    %873 = vmatprep.subr.mxu0 0.0
    %874 = vmatpush1.msra.mxu0 0.0
    %875 = vmatprep.subr.mxu0 0.0
    %876 = vmatpush1.msra.mxu0 0.0
    %877 = vmatprep.subr.mxu0 0.0
    %878 = vmatpush1.msra.mxu0 0.0
    %879 = vmatprep.subr.mxu0 0.0
    %880 = vmatpush1.msra.mxu0 0.0
    %881 = vmatprep.subr.mxu0 0.0
    %882 = vmatpush1.msra.mxu0 0.0
    %883 = vmatprep.subr.mxu0 0.0
    %884 = vmatpush1.msra.mxu0 0.0
    %885 = vmatprep.subr.mxu0 0.0
    %886 = vmatpush1.msra.mxu0 0.0
    %887 = vmatprep.subr.mxu0 0.0
    %888 = vmatpush1.msra.mxu0 0.0
    %889 = vmatprep.subr.mxu0 0.0
    %890 = vmatpush1.msra.mxu0 0.0
    %891 = vmatprep.subr.mxu0 0.0
    %892 = vmatpush1.msra.mxu0 0.0
    %893 = vmatprep.subr.mxu0 0.0
    %894 = vmatpush1.msra.mxu0 0.0
    %895 = vmatprep.subr.mxu0 0.0
    %896 = vmatpush1.msra.mxu0 0.0
    %897 = vmatprep.subr.mxu0 0.0
    %898 = vmatpush1.msra.mxu0 0.0
    %899 = vmatprep.subr.mxu0 0.0
    %900 = vmatpush1.msra.mxu0 0.0
    %901 = vmatprep.subr.mxu0 0.0
    %902 = vmatpush1.msra.mxu0 %v869
    %903 = vmatprep.subr.mxu0 0.0
    %904 = vmatpush2.msra.mxu0 0.0
    %905 = vmatprep.subr.mxu0 0.0
    %906 = vmatpush2.msra.mxu0 0.0
    %907 = vmatprep.subr.mxu0 0.0
    %908 = vmatpush2.msra.mxu0 0.0
    %909 = vmatprep.subr.mxu0 0.0
    %910 = vmatpush2.msra.mxu0 0.0
    %911 = vmatprep.subr.mxu0 0.0
    %912 = vmatpush2.msra.mxu0 0.0
    %913 = vmatprep.subr.mxu0 0.0
    %914 = vmatpush2.msra.mxu0 0.0
    %915 = vmatprep.subr.mxu0 0.0
    %916 = vmatpush2.msra.mxu0 0.0
    %917 = vmatprep.subr.mxu0 0.0
    %918 = vmatpush2.msra.mxu0 0.0
    %919 = vmatprep.subr.mxu0 0.0
    %920 = vmatpush2.msra.mxu0 0.0
    %921 = vmatprep.subr.mxu0 0.0
    %922 = vmatpush2.msra.mxu0 0.0
    %923 = vmatprep.subr.mxu0 0.0
    %924 = vmatpush2.msra.mxu0 0.0
    %925 = vmatprep.subr.mxu0 0.0
    %926 = vmatpush2.msra.mxu0 0.0
    %927 = vmatprep.subr.mxu0 0.0
    %928 = vmatpush2.msra.mxu0 0.0
    %929 = vmatprep.subr.mxu0 0.0
    %930 = vmatpush2.msra.mxu0 0.0
    %931 = vmatprep.subr.mxu0 0.0
    %932 = vmatpush2.msra.mxu0 0.0
    %933 = vmatprep.subr.mxu0 0.0
    %934 = vmatpush2.msra.mxu0 0.0
    %935 = vmatprep.mubr.f32.mxu0 0.0
    %936 = vmatmul.mubr.f32.gmra.mxu0 %v866
    %v937 = vpop.f32.mrf.mxu0
    %v938 = vadd.f32 %v863, %v937
    %v939 = vpop.f32.mrf.mxu0
    %940 = vdwg.mxu0
    %942 = vset.pattern.permute.xlu0 0
    %943 = vperm.xlu0 %942, %v703
    %v944 = vpop.permute.xlu0 %943
    %v946 = vadd.f32 %v938, %v944
    %vm947 = vcmp.gt.f32.partialorder %v946, 0.0
    %v948 = vmin.f32 %v946, 0.0
    %v949 = vmul.f32 %v948, 1.442695
    %v950 = vpow.pop %v949
    %v951 = vsub.f32 %v950, 1.0
    %v952 = vsel %vm947, %v946, %v951
    %v953 = vmul.f32 %v952, %v557
    %vm954 = vcmask 338944
    %955 = vst.msk [vmem:[#allocation3] sm:$0xf] %vm954, 0.0
    %957 = vrot.lane.b32.xlu0 %v953, 2
    %v958 = vpop.permute.xlu0 %957
    %vm960 = vcmask 330768
    %961 = vst.msk [vmem:[#allocation3] sm:$0xf] %vm960, %v958
    %v962 = vld [vmem:[#allocation3] sm:$0xf]
    %964 = vset.pattern.permute.xlu0 0
    %965 = vperm.xlu0 %964, %v704
    %v966 = vpop.permute.xlu0 %965
    %v968 = vmul.f32 %v966, %v962
    %v969 = vadd.f32 %v968, 0.0
    %970 = vset.pattern.permute.xlu0 1
    %971 = vperm.xlu0 %970, %v704
    %v972 = vpop.permute.xlu0 %971
    %v974 = vmul.f32 %v972, %v962
    %976 = vrot.lane.b32.xlu0 %v974, 127
    %v977 = vpop.permute.xlu0 %976
    %v979 = vadd.f32 %v969, %v977
    %980 = vset.pattern.permute.xlu0 2
    %981 = vperm.xlu0 %980, %v704
    %v982 = vpop.permute.xlu0 %981
    %v984 = vmul.f32 %v982, %v962
    %986 = vrot.lane.b32.xlu0 %v984, 126
    %v987 = vpop.permute.xlu0 %986
    %v989 = vadd.f32 %v979, %v987
    %990 = vset.pattern.permute.xlu0 3
    %991 = vperm.xlu0 %990, %v704
    %v992 = vpop.permute.xlu0 %991
    %v994 = vmul.f32 %v992, %v962
    %996 = vrot.lane.b32.xlu0 %v994, 125
    %v997 = vpop.permute.xlu0 %996
    %v999 = vadd.f32 %v989, %v997
    %1001 = vset.pattern.permute.xlu0 0
    %1002 = vperm.xlu0 %1001, %v706
    %v1003 = vpop.permute.xlu0 %1002
    %v1006 = vsel %vm155, %v705, 0
    %v1009 = vsel %vm158, %v999, 0
    %1011 = vmatprep.subr.mxu0 0.0
    %1012 = vmatpush1.msra.mxu0 0.0
    %1013 = vmatprep.subr.mxu0 0.0
    %1014 = vmatpush1.msra.mxu0 0.0
    %1015 = vmatprep.subr.mxu0 0.0
    %1016 = vmatpush1.msra.mxu0 0.0
    %1017 = vmatprep.subr.mxu0 0.0
    %1018 = vmatpush1.msra.mxu0 0.0
    %1019 = vmatprep.subr.mxu0 0.0
    %1020 = vmatpush1.msra.mxu0 0.0
    %1021 = vmatprep.subr.mxu0 0.0
    %1022 = vmatpush1.msra.mxu0 0.0
    %1023 = vmatprep.subr.mxu0 0.0
    %1024 = vmatpush1.msra.mxu0 0.0
    %1025 = vmatprep.subr.mxu0 0.0
    %1026 = vmatpush1.msra.mxu0 0.0
    %1027 = vmatprep.subr.mxu0 0.0
    %1028 = vmatpush1.msra.mxu0 0.0
    %1029 = vmatprep.subr.mxu0 0.0
    %1030 = vmatpush1.msra.mxu0 0.0
    %1031 = vmatprep.subr.mxu0 0.0
    %1032 = vmatpush1.msra.mxu0 0.0
    %1033 = vmatprep.subr.mxu0 0.0
    %1034 = vmatpush1.msra.mxu0 0.0
    %1035 = vmatprep.subr.mxu0 0.0
    %1036 = vmatpush1.msra.mxu0 0.0
    %1037 = vmatprep.subr.mxu0 0.0
    %1038 = vmatpush1.msra.mxu0 0.0
    %1039 = vmatprep.subr.mxu0 0.0
    %1040 = vmatpush1.msra.mxu0 0.0
    %1041 = vmatprep.subr.mxu0 0.0
    %1042 = vmatpush1.msra.mxu0 %v1009
    %1043 = vmatprep.subr.mxu0 0.0
    %1044 = vmatpush2.msra.mxu0 0.0
    %1045 = vmatprep.subr.mxu0 0.0
    %1046 = vmatpush2.msra.mxu0 0.0
    %1047 = vmatprep.subr.mxu0 0.0
    %1048 = vmatpush2.msra.mxu0 0.0
    %1049 = vmatprep.subr.mxu0 0.0
    %1050 = vmatpush2.msra.mxu0 0.0
    %1051 = vmatprep.subr.mxu0 0.0
    %1052 = vmatpush2.msra.mxu0 0.0
    %1053 = vmatprep.subr.mxu0 0.0
    %1054 = vmatpush2.msra.mxu0 0.0
    %1055 = vmatprep.subr.mxu0 0.0
    %1056 = vmatpush2.msra.mxu0 0.0
    %1057 = vmatprep.subr.mxu0 0.0
    %1058 = vmatpush2.msra.mxu0 0.0
    %1059 = vmatprep.subr.mxu0 0.0
    %1060 = vmatpush2.msra.mxu0 0.0
    %1061 = vmatprep.subr.mxu0 0.0
    %1062 = vmatpush2.msra.mxu0 0.0
    %1063 = vmatprep.subr.mxu0 0.0
    %1064 = vmatpush2.msra.mxu0 0.0
    %1065 = vmatprep.subr.mxu0 0.0
    %1066 = vmatpush2.msra.mxu0 0.0
    %1067 = vmatprep.subr.mxu0 0.0
    %1068 = vmatpush2.msra.mxu0 0.0
    %1069 = vmatprep.subr.mxu0 0.0
    %1070 = vmatpush2.msra.mxu0 0.0
    %1071 = vmatprep.subr.mxu0 0.0
    %1072 = vmatpush2.msra.mxu0 0.0
    %1073 = vmatprep.subr.mxu0 0.0
    %1074 = vmatpush2.msra.mxu0 0.0
    %1075 = vmatprep.mubr.f32.mxu0 0.0
    %1076 = vmatmul.mubr.f32.gmra.mxu0 %v1006
    %v1077 = vpop.f32.mrf.mxu0
    %v1078 = vadd.f32 %v1003, %v1077
    %v1079 = vpop.f32.mrf.mxu0
    %1080 = vdwg.mxu0
    %vm1081 = vcmp.gt.f32.partialorder %v1078, 0.0
    %v1082 = vmin.f32 %v1078, 0.0
    %v1083 = vmul.f32 %v1082, 1.442695
    %v1084 = vpow.pop %v1083
    %v1085 = vsub.f32 %v1084, 1.0
    %v1086 = vsel %vm1081, %v1078, %v1085
    %v1087 = vmul.f32 %v1086, %v707
    %vm1088 = vcmask 314368
    %v1089 = vsel %vm1088, %v1087, 0.0
    %v1090 = vrot.slane %v1089, 4
    %v1091 = vadd.f32 %v1089, %v1090
    %v1092 = vrot.slane %v1091, 2
    %v1093 = vadd.f32 %v1091, %v1092
    %v1094 = vrot.slane %v1093, 1
    %v1095 = vadd.f32 %v1093, %v1094
    %v1096 = vadd.f32 %v699, %v1095
    %v1097 = vld [vmem:[%s17] sm:$0xff]
    %v1098 = vld [vmem:[%s17 + $0x8] sm:$0xff]
    %v1099 = vld [vmem:[%s17 + $0x10] sm:$0xff]
    %v1100 = vld [vmem:[%s17 + $0x18] sm:$0xff]
    %v1101 = vld [vmem:[%s17 + $0x20] sm:$0x7f]
    %v1102 = vld [vmem:[#allocation4] sm:$0x1]
    %1104 = vset.pattern.permute.xlu0 0
    %1105 = vperm.xlu0 %1104, %v1102
    %v1106 = vpop.permute.xlu0 %1105
    %v1108 = vlaneseq
    %v1109 = vshrl.u32 %v1108, 7
    %v1110 = vsub.s32 0, %v1109
    %v1111 = vrot.slane %v1106, %v1110
    %v1113 = vsel %vm692, %v1096, 0
    %vm1115 = vcmask 1046528
    %v1117 = vsel %vm1115, %v1101, 0
    %1119 = vmatprep.subr.mxu0 0.0
    %1120 = vmatpush1.msra.mxu0 0.0
    %1121 = vmatprep.subr.mxu0 0.0
    %1122 = vmatpush1.msra.mxu0 0.0
    %1123 = vmatprep.subr.mxu0 0.0
    %1124 = vmatpush1.msra.mxu0 0.0
    %1125 = vmatprep.subr.mxu0 0.0
    %1126 = vmatpush1.msra.mxu0 0.0
    %1127 = vmatprep.subr.mxu0 0.0
    %1128 = vmatpush1.msra.mxu0 0.0
    %1129 = vmatprep.subr.mxu0 0.0
    %1130 = vmatpush1.msra.mxu0 0.0
    %1131 = vmatprep.subr.mxu0 0.0
    %1132 = vmatpush1.msra.mxu0 0.0
    %1133 = vmatprep.subr.mxu0 0.0
    %1134 = vmatpush1.msra.mxu0 0.0
    %1135 = vmatprep.subr.mxu0 0.0
    %1136 = vmatpush1.msra.mxu0 0.0
    %1137 = vmatprep.subr.mxu0 0.0
    %1138 = vmatpush1.msra.mxu0 0.0
    %1139 = vmatprep.subr.mxu0 0.0
    %1140 = vmatpush1.msra.mxu0 0.0
    %1141 = vmatprep.subr.mxu0 0.0
    %1142 = vmatpush1.msra.mxu0 %v1117
    %1143 = vmatprep.subr.mxu0 0.0
    %1144 = vmatpush1.msra.mxu0 %v1100
    %1145 = vmatprep.subr.mxu0 0.0
    %1146 = vmatpush1.msra.mxu0 %v1099
    %1147 = vmatprep.subr.mxu0 0.0
    %1148 = vmatpush1.msra.mxu0 %v1098
    %1149 = vmatprep.subr.mxu0 0.0
    %1150 = vmatpush1.msra.mxu0 %v1097
    %1151 = vmatprep.subr.mxu0 0.0
    %1152 = vmatpush2.msra.mxu0 0.0
    %1153 = vmatprep.subr.mxu0 0.0
    %1154 = vmatpush2.msra.mxu0 0.0
    %1155 = vmatprep.subr.mxu0 0.0
    %1156 = vmatpush2.msra.mxu0 0.0
    %1157 = vmatprep.subr.mxu0 0.0
    %1158 = vmatpush2.msra.mxu0 0.0
    %1159 = vmatprep.subr.mxu0 0.0
    %1160 = vmatpush2.msra.mxu0 0.0
    %1161 = vmatprep.subr.mxu0 0.0
    %1162 = vmatpush2.msra.mxu0 0.0
    %1163 = vmatprep.subr.mxu0 0.0
    %1164 = vmatpush2.msra.mxu0 0.0
    %1165 = vmatprep.subr.mxu0 0.0
    %1166 = vmatpush2.msra.mxu0 0.0
    %1167 = vmatprep.subr.mxu0 0.0
    %1168 = vmatpush2.msra.mxu0 0.0
    %1169 = vmatprep.subr.mxu0 0.0
    %1170 = vmatpush2.msra.mxu0 0.0
    %1171 = vmatprep.subr.mxu0 0.0
    %1172 = vmatpush2.msra.mxu0 0.0
    %1173 = vmatprep.subr.mxu0 0.0
    %1174 = vmatpush2.msra.mxu0 0.0
    %1175 = vmatprep.subr.mxu0 0.0
    %1176 = vmatpush2.msra.mxu0 0.0
    %1177 = vmatprep.subr.mxu0 0.0
    %1178 = vmatpush2.msra.mxu0 0.0
    %1179 = vmatprep.subr.mxu0 0.0
    %1180 = vmatpush2.msra.mxu0 0.0
    %1181 = vmatprep.subr.mxu0 0.0
    %1182 = vmatpush2.msra.mxu0 0.0
    %1183 = vmatprep.mubr.f32.mxu0 0.0
    %1184 = vmatmul.mubr.f32.gmra.mxu0 %v1113
    %v1185 = vpop.f32.mrf.mxu0
    %v1186 = vadd.f32 %v1111, %v1185
    %v1187 = vpop.f32.mrf.mxu0
    %1188 = vdwg.mxu0
    %vm1189 = vcmask 8192
    %1190 = vst.msk [vmem:[#allocation5] sm:$0x1] %vm1189, %v1186
    // Predicated region
    $region78: #{tpu_custom_call.1} parent=1 // pred_check
      _
    $region79: #{tpu_custom_call.1} parent=1 // pred_check_branch
      %1192 = sbr.rel (0) target = $region81
    $region80: #{tpu_custom_call.1} parent=1 // pred_region
      %s1194 = ssub.s32 16, 16
      %1195 = vsyncadd [#allocation6], %s1194
      %s1197 = sshll.u32 [#allocation5], 4
      %s1198 = int_to_ptr.vmem [resolvable:$true] %s1197
      %1200 = dma.vmem_to_hbm [thread:$0]  %s1198, 16, %s19, [#allocation6]
    $region81: #{tpu_custom_call.1} parent=1 // pred_fallthru
      _
    // Predicated region
    $region82: #{tpu_custom_call.1} parent=1 // pred_check
      _
    $region83: #{tpu_custom_call.1} parent=1 // pred_check_branch
      %1202 = sbr.rel (0) target = $region85
    $region84: #{tpu_custom_call.1} parent=1 // pred_region
      %1203 = dma.done [#allocation6], 16
    $region85: #{tpu_custom_call.1} parent=1 // pred_fallthru
      _
    %1204 = vsyncpa [#allocation6], 1

</llo_original>
